<compile_context>
chip_gen: v7x
topology: tpu7x:2x2x1
jax: 0.10.0
libtpu: 0.0.40
codegen_flags: <defaults>
</compile_context>

<pallas_src>
import functools

import jax
import jax.numpy as jnp
from jax.experimental import pallas as pl
from jax.experimental.pallas import tpu as pltpu


# ----------------------------- Pallas kernels ------------------------------ #

def _matmul_bias_kernel(p_ref, w_ref, b_ref, o_ref):
    """One M-tile of  out = patches @ W + bias  (bf16 operands, f32 accumulate)."""
    o_ref[...] = (
        jnp.dot(p_ref[...], w_ref[...], preferred_element_type=jnp.float32)
        + b_ref[...]
    )


def _matmul_bias_bn_relu_kernel(p_ref, w_ref, b_ref, g_ref, bt_ref, o_ref, *,
                                eps, cout, rows):
    """out = relu(batchnorm(patches @ W + bias)), fully fused in one block.

    The matmul output columns are the 4 stride-2 output phases stacked as
    (ph, pw, channel) -> 4*cout columns, so the per-channel batch statistics
    pool over all rows AND the 4 phase column-groups (== all output pixels).
    """
    y = jnp.dot(p_ref[...], w_ref[...], preferred_element_type=jnp.float32)
    y = y + b_ref[...]                                        # (rows, 4*cout) f32

    def fold(v):                                              # (1, 4*cout) -> (1, cout)
        return (v[:, 0 * cout:1 * cout] + v[:, 1 * cout:2 * cout]
                + v[:, 2 * cout:3 * cout] + v[:, 3 * cout:4 * cout])

    cnt = 4.0 * rows
    mean_c = fold(jnp.sum(y, axis=0, keepdims=True)) / cnt    # (1, cout)
    d = y - jnp.concatenate([mean_c] * 4, axis=1)
    var_c = fold(jnp.sum(d * d, axis=0, keepdims=True)) / cnt  # biased var (PyTorch BN fwd)
    scale_c = jax.lax.rsqrt(var_c + eps) * g_ref[...]
    shift_c = bt_ref[...] - mean_c * scale_c
    scale4 = jnp.concatenate([scale_c] * 4, axis=1)
    shift4 = jnp.concatenate([shift_c] * 4, axis=1)
    o_ref[...] = jnp.maximum(y * scale4 + shift4, 0.0)


# -------------------- sub-pixel decomposition (JAX glue) -------------------- #
# ConvTranspose2d(k=5, stride=2, padding=1, output_padding=1):
#   out[2r+ph, 2s+pw] = sum_{dh,dw} xpad[r+dh, s+dw] * W[kmap[ph][dh], kmap[pw][dw]]
# with xpad = pad(x, (1, 2)) per spatial dim, kmap[0] = (3, 1, -), kmap[1] = (4, 2, 0).
_KMAP = ((3, 1, -1), (4, 2, 0))


def _subpixel_patches(x_nhwc):
    """(N, H, W, C) -> (N*(H+1)*(W+1), 9*C): im2col of the 3x3 phase window."""
    n, h, w, c = x_nhwc.shape
    xp = jnp.pad(x_nhwc, ((0, 0), (1, 2), (1, 2), (0, 0)))
    cols = [xp[:, dh:dh + h + 1, dw:dw + w + 1, :]
            for dh in range(3) for dw in range(3)]
    pat = jnp.stack(cols, axis=3)                             # (N, H+1, W+1, 9, C)
    return pat.reshape(n * (h + 1) * (w + 1), 9 * c)


def _subpixel_weights(w_t):
    """PyTorch ConvTranspose2d weight (Cin, Cout, 5, 5) -> (9*Cin, 4*Cout)."""
    cin, cout, k, _ = w_t.shape
    assert k == 5
    w4 = jnp.zeros((3, 3, cin, 2, 2, cout), w_t.dtype)
    for ph in range(2):
        for pw in range(2):
            for dh in range(3):
                kh = _KMAP[ph][dh]
                if kh < 0:
                    continue
                for dw in range(3):
                    kw = _KMAP[pw][dw]
                    if kw < 0:
                        continue
                    w4 = w4.at[dh, dw, :, ph, pw, :].set(w_t[:, :, kh, kw])
    return w4.reshape(9 * cin, 4 * cout)


def _phase_interleave(y, n, hp, wp, cout):
    """(N*hp*wp, 4*cout) phase-stacked -> (N, 2*hp, 2*wp, cout) (depth-to-space)."""
    y = y.reshape(n, hp, wp, 2, 2, cout)
    y = jnp.transpose(y, (0, 1, 3, 2, 4, 5))
    return y.reshape(n, 2 * hp, 2 * wp, cout)


# --------------------------- pallas_call wrappers --------------------------- #

def _conv_matmul(patches, w4, bias4, *, tm=384):
    """out = patches @ w4 + bias4, tiled over M with a parallel grid (megacore-able)."""
    m, k = patches.shape
    n4 = w4.shape[1]
    mp = -(-m // tm) * tm
    if mp != m:
        patches = jnp.pad(patches, ((0, mp - m), (0, 0)))     # zero rows, sliced off below
    out = pl.pallas_call(
        _matmul_bias_kernel,
        out_shape=jax.ShapeDtypeStruct((mp, n4), jnp.float32),
        grid=(mp // tm,),
        in_specs=[
            pl.BlockSpec((tm, k), lambda i: (i, 0)),
            pl.BlockSpec((k, n4), lambda i: (0, 0)),
            pl.BlockSpec((1, n4), lambda i: (0, 0)),
        ],
        out_specs=pl.BlockSpec((tm, n4), lambda i: (i, 0)),
        compiler_params=pltpu.CompilerParams(
            dimension_semantics=("parallel",),
            vmem_limit_bytes=32 * 1024 * 1024,
        ),
    )(patches, w4, bias4)
    return out[:m]


def _conv_matmul_bn_relu(patches, w4, bias4, gamma, beta, *, eps=1e-5):
    """Single-block matmul with fused training-mode BatchNorm + ReLU.

    Kept as one resident block so the fused BN statistics cover all output pixels.
    # TODO(synk): if M grows beyond VMEM, tile M and add a cross-tile BN reduction.
    """
    m, k = patches.shape
    n4 = w4.shape[1]
    cout = n4 // 4
    kernel = functools.partial(_matmul_bias_bn_relu_kernel,
                               eps=eps, cout=cout, rows=m)
    return pl.pallas_call(
        kernel,
        out_shape=jax.ShapeDtypeStruct((m, n4), jnp.float32),
        grid=(1,),
        in_specs=[
            pl.BlockSpec((m, k), lambda i: (0, 0)),
            pl.BlockSpec((k, n4), lambda i: (0, 0)),
            pl.BlockSpec((1, n4), lambda i: (0, 0)),
            pl.BlockSpec((1, cout), lambda i: (0, 0)),
            pl.BlockSpec((1, cout), lambda i: (0, 0)),
        ],
        out_specs=pl.BlockSpec((m, n4), lambda i: (0, 0)),
        compiler_params=pltpu.CompilerParams(
            dimension_semantics=("arbitrary",)),
    )(patches, w4, bias4, gamma, beta)


def conv_transpose2d_pallas(x_nhwc, w_t, bias, *, gamma=None, beta=None, eps=1e-5):
    """ConvTranspose2d(k=5, s=2, p=1, op=1) (+ optional fused BN+ReLU), NHWC in/out."""
    n, h, w, _ = x_nhwc.shape
    cout = w_t.shape[1]
    patches = _subpixel_patches(x_nhwc).astype(jnp.bfloat16)
    w4 = _subpixel_weights(w_t).astype(jnp.bfloat16)
    bias4 = jnp.tile(bias.astype(jnp.float32), 4).reshape(1, 4 * cout)
    if gamma is None:
        y = _conv_matmul(patches, w4, bias4)
    else:
        y = _conv_matmul_bn_relu(
            patches, w4, bias4,
            gamma.astype(jnp.float32).reshape(1, cout),
            beta.astype(jnp.float32).reshape(1, cout), eps=eps)
    return _phase_interleave(y, n, h + 1, w + 1, cout)


def decoder_forward(x_nchw, params):
    x = jnp.transpose(x_nchw, (0, 2, 3, 1))                   # NCHW -> NHWC
    y1 = conv_transpose2d_pallas(x, params["w1"], params["b1"],
                                 gamma=params["gamma"], beta=params["beta"])
    y2 = conv_transpose2d_pallas(y1, params["w2"], params["b2"])
    return jnp.transpose(y2, (0, 3, 1, 2))                    # NHWC -> NCHW


# ------------------------------- references --------------------------------- #

def _ref_conv_transpose_f32(x_nhwc, w_t, bias):
    """Independent full-f32 ConvTranspose2d(k=5, s=2, p=1, op=1) via XLA conv."""
    k = w_t.shape[-1]
    w_hwio = jnp.transpose(w_t[:, :, ::-1, ::-1], (2, 3, 0, 1))
    y = jax.lax.conv_general_dilated(
        x_nhwc, w_hwio, window_strides=(1, 1),
        padding=((k - 2, k - 1), (k - 2, k - 1)),
        lhs_dilation=(2, 2),
        dimension_numbers=("NHWC", "HWIO", "NHWC"),
        precision=jax.lax.Precision.HIGHEST)
    return y + bias[None, None, None, :]


def _ref_decoder_f32(x_nchw, params, eps=1e-5):
    x = jnp.transpose(x_nchw, (0, 2, 3, 1))
    y1 = _ref_conv_transpose_f32(x, params["w1"], params["b1"])
    mean = jnp.mean(y1, axis=(0, 1, 2), keepdims=True)
    var = jnp.mean((y1 - mean) ** 2, axis=(0, 1, 2), keepdims=True)
    y1 = (y1 - mean) / jnp.sqrt(var + eps) * params["gamma"] + params["beta"]
    y1 = jnp.maximum(y1, 0.0)
    y2 = _ref_conv_transpose_f32(y1, params["w2"], params["b2"])
    return jnp.transpose(y2, (0, 3, 1, 2))


def _ref_decoder_matched(x_nchw, params, eps=1e-5):
    """Same sub-pixel / bf16-operand math as the Pallas path, with plain jnp.dot."""
    x = jnp.transpose(x_nchw, (0, 2, 3, 1))

    def conv(x_nhwc, w_t, bias):
        nn, hh, ww, _ = x_nhwc.shape
        cout = w_t.shape[1]
        p = _subpixel_patches(x_nhwc).astype(jnp.bfloat16)
        wm = _subpixel_weights(w_t).astype(jnp.bfloat16)
        y = jnp.dot(p, wm, preferred_element_type=jnp.float32)
        y = y + jnp.tile(bias, 4)[None, :]
        return y, (nn, hh + 1, ww + 1, cout)

    y1, (n1, hp1, wp1, c1) = conv(x, params["w1"], params["b1"])
    y1r = y1.reshape(-1, 4, c1)
    mean = jnp.mean(y1r, axis=(0, 1))
    var = jnp.mean((y1r - mean) ** 2, axis=(0, 1))
    y1r = (y1r - mean) * jax.lax.rsqrt(var + eps) * params["gamma"] + params["beta"]
    y1 = jnp.maximum(y1r, 0.0).reshape(y1.shape)
    a1 = _phase_interleave(y1, n1, hp1, wp1, c1)

    y2, (n2, hp2, wp2, c2) = conv(a1, params["w2"], params["b2"])
    out = _phase_interleave(y2, n2, hp2, wp2, c2)
    return jnp.transpose(out, (0, 3, 1, 2))


# ---------------------------------- main ------------------------------------ #

if __name__ == "__main__":
    # Small config consistent with the module: filters=8, expansions=[2], out_ch=8, k=5.
    filters, out_ch, kernel_size = 8, 8, 5
    expansions = [2]
    in_ch = filters * expansions[0]                           # 16
    N, H, W = 2, 8, 8

    key = jax.random.PRNGKey(0)
    k_x, k_w1, k_b1, k_w2, k_b2 = jax.random.split(key, 5)

    x = jax.random.normal(k_x, (N, in_ch, H, W), jnp.float32)  # NCHW, like PyTorch

    params = {
        # ConvTranspose2d weights keep the PyTorch layout (Cin, Cout, KH, KW).
        "w1": jax.random.normal(k_w1, (in_ch, filters, kernel_size, kernel_size),
                                jnp.float32) * 0.05,
        "b1": jax.random.normal(k_b1, (filters,), jnp.float32) * 0.01,
        # BatchNorm2d: weight=1, bias=0 (as in _initialize_weights / default).
        "gamma": jnp.ones((filters,), jnp.float32),
        "beta": jnp.zeros((filters,), jnp.float32),
        "w2": jax.random.normal(k_w2, (filters, out_ch, kernel_size, kernel_size),
                                jnp.float32) * 0.05,
        "b2": jax.random.normal(k_b2, (out_ch,), jnp.float32) * 0.01,
    }
    # TODO(synk): BatchNorm running-stat updates (training-mode side effect) are not
    # reproduced; they do not affect the forward output.

    out = jax.block_until_ready(jax.jit(decoder_forward)(x, params))

    # Shape check: each ConvT(k=5, s=2, p=1, op=1) maps S -> 2S+2, so H -> 4H+6.
    expected_shape = (N, out_ch, 4 * H + 6, 4 * W + 6)
    assert out.shape == expected_shape, (out.shape, expected_shape)
    assert bool(jnp.all(jnp.isfinite(out)))

    # Structural check at matched (bf16-operand / f32-accumulate) precision.
    ref_m = _ref_decoder_matched(x, params)
    err_m = float(jnp.max(jnp.abs(out - ref_m)))
    assert err_m < 1e-3, err_m

    # End-to-end check vs. an independent full-f32 XLA ConvTranspose reference
    # (tolerance covers the intentional bf16 operand cast inside the kernels).
    ref_f = _ref_decoder_f32(x, params)
    assert bool(jnp.allclose(out, ref_f, atol=3e-2, rtol=3e-2)), float(
        jnp.max(jnp.abs(out - ref_f)))

    print("KERNEL_OK")
</pallas_src>

<mosaic_0001>
module attributes {stable_mosaic.version = 11 : i64} {
  func.func @_matmul_bias_bn_relu_kernel(%arg0: i32, %arg1: memref<162x144xbf16, #tpu.memory_space<vmem>>, %arg2: memref<144x32xbf16, #tpu.memory_space<vmem>>, %arg3: memref<1x32xf32, #tpu.memory_space<vmem>>, %arg4: memref<1x8xf32, #tpu.memory_space<vmem>>, %arg5: memref<1x8xf32, #tpu.memory_space<vmem>>, %arg6: memref<162x32xf32, #tpu.memory_space<vmem>>) attributes {dimension_semantics = [#tpu.dimension_semantics<arbitrary>], iteration_bounds = array<i64: 1>, scalar_prefetch = 0 : i64, scratch_operands = 0 : i64, tpu.core_type = #tpu.core_type<tc>, window_params = [{pipeline_mode = #tpu.pipeline_mode<synchronous>, transform_indices = @transform_0, window_bounds = array<i64: 162, 144>}, {pipeline_mode = #tpu.pipeline_mode<synchronous>, transform_indices = @transform_1, window_bounds = array<i64: 144, 32>}, {pipeline_mode = #tpu.pipeline_mode<synchronous>, transform_indices = @transform_2, window_bounds = array<i64: 1, 32>}, {pipeline_mode = #tpu.pipeline_mode<synchronous>, transform_indices = @transform_3, window_bounds = array<i64: 1, 8>}, {pipeline_mode = #tpu.pipeline_mode<synchronous>, transform_indices = @transform_4, window_bounds = array<i64: 1, 8>}, {pipeline_mode = #tpu.pipeline_mode<synchronous>, transform_indices = @transform_5, window_bounds = array<i64: 162, 32>}]} {
    %c0 = arith.constant 0 : index
    %c0_0 = arith.constant 0 : index
    %0 = vector.load %arg1[%c0, %c0_0] : memref<162x144xbf16, #tpu.memory_space<vmem>>, vector<162x144xbf16>
    %c0_1 = arith.constant 0 : index
    %c0_2 = arith.constant 0 : index
    %1 = vector.load %arg2[%c0_1, %c0_2] : memref<144x32xbf16, #tpu.memory_space<vmem>>, vector<144x32xbf16>
    %cst = arith.constant dense<0.000000e+00> : vector<162x32xf32>
    %2 = tpu.matmul %0, %1, %cst {dimension_numbers = #tpu.dot_dimension_numbers<[1], [0], [0], [1], [0, 0, 1, 1], [], []>} : vector<162x144xbf16>, vector<144x32xbf16>, vector<162x32xf32> -> vector<162x32xf32>
    %c0_3 = arith.constant 0 : index
    %c0_4 = arith.constant 0 : index
    %3 = vector.load %arg3[%c0_3, %c0_4] : memref<1x32xf32, #tpu.memory_space<vmem>>, vector<1x32xf32>
    %4 = vector.broadcast %3 : vector<1x32xf32> to vector<162x32xf32>
    %5 = arith.addf %2, %4 : vector<162x32xf32>
    %cst_5 = arith.constant dense<0.000000e+00> : vector<32xf32>
    %6 = vector.multi_reduction <add>, %5, %cst_5 [0] : vector<162x32xf32> to vector<32xf32>
    %7 = vector.shape_cast %6 : vector<32xf32> to vector<1x32xf32>
    %8 = vector.extract_strided_slice %7 {offsets = [0, 0], sizes = [1, 8], strides = [1, 1]} : vector<1x32xf32> to vector<1x8xf32>
    %9 = vector.extract_strided_slice %7 {offsets = [0, 8], sizes = [1, 8], strides = [1, 1]} : vector<1x32xf32> to vector<1x8xf32>
    %10 = arith.addf %8, %9 : vector<1x8xf32>
    %11 = vector.extract_strided_slice %7 {offsets = [0, 16], sizes = [1, 8], strides = [1, 1]} : vector<1x32xf32> to vector<1x8xf32>
    %12 = arith.addf %10, %11 : vector<1x8xf32>
    %13 = vector.extract_strided_slice %7 {offsets = [0, 24], sizes = [1, 8], strides = [1, 1]} : vector<1x32xf32> to vector<1x8xf32>
    %14 = arith.addf %12, %13 : vector<1x8xf32>
    %cst_6 = arith.constant 6.480000e+02 : f32
    %15 = vector.broadcast %cst_6 : f32 to vector<1x8xf32>
    %16 = arith.divf %14, %15 : vector<1x8xf32>
    %17 = tpu.concatenate %16, %16, %16, %16 in 1 : vector<1x8xf32>, vector<1x8xf32>, vector<1x8xf32>, vector<1x8xf32> -> vector<1x32xf32>
    %18 = vector.broadcast %17 : vector<1x32xf32> to vector<162x32xf32>
    %19 = arith.subf %5, %18 : vector<162x32xf32>
    %20 = arith.mulf %19, %19 : vector<162x32xf32>
    %cst_7 = arith.constant dense<0.000000e+00> : vector<32xf32>
    %21 = vector.multi_reduction <add>, %20, %cst_7 [0] : vector<162x32xf32> to vector<32xf32>
    %22 = vector.shape_cast %21 : vector<32xf32> to vector<1x32xf32>
    %23 = vector.extract_strided_slice %22 {offsets = [0, 0], sizes = [1, 8], strides = [1, 1]} : vector<1x32xf32> to vector<1x8xf32>
    %24 = vector.extract_strided_slice %22 {offsets = [0, 8], sizes = [1, 8], strides = [1, 1]} : vector<1x32xf32> to vector<1x8xf32>
    %25 = arith.addf %23, %24 : vector<1x8xf32>
    %26 = vector.extract_strided_slice %22 {offsets = [0, 16], sizes = [1, 8], strides = [1, 1]} : vector<1x32xf32> to vector<1x8xf32>
    %27 = arith.addf %25, %26 : vector<1x8xf32>
    %28 = vector.extract_strided_slice %22 {offsets = [0, 24], sizes = [1, 8], strides = [1, 1]} : vector<1x32xf32> to vector<1x8xf32>
    %29 = arith.addf %27, %28 : vector<1x8xf32>
    %cst_8 = arith.constant 6.480000e+02 : f32
    %30 = vector.broadcast %cst_8 : f32 to vector<1x8xf32>
    %31 = arith.divf %29, %30 : vector<1x8xf32>
    %cst_9 = arith.constant 9.99999974E-6 : f32
    %32 = vector.broadcast %cst_9 : f32 to vector<1x8xf32>
    %33 = arith.addf %31, %32 : vector<1x8xf32>
    %34 = math.rsqrt %33 : vector<1x8xf32>
    %c0_10 = arith.constant 0 : index
    %c0_11 = arith.constant 0 : index
    %35 = vector.load %arg4[%c0_10, %c0_11] : memref<1x8xf32, #tpu.memory_space<vmem>>, vector<1x8xf32>
    %36 = arith.mulf %34, %35 : vector<1x8xf32>
    %c0_12 = arith.constant 0 : index
    %c0_13 = arith.constant 0 : index
    %37 = vector.load %arg5[%c0_12, %c0_13] : memref<1x8xf32, #tpu.memory_space<vmem>>, vector<1x8xf32>
    %38 = arith.mulf %16, %36 : vector<1x8xf32>
    %39 = arith.subf %37, %38 : vector<1x8xf32>
    %40 = tpu.concatenate %36, %36, %36, %36 in 1 : vector<1x8xf32>, vector<1x8xf32>, vector<1x8xf32>, vector<1x8xf32> -> vector<1x32xf32>
    %41 = tpu.concatenate %39, %39, %39, %39 in 1 : vector<1x8xf32>, vector<1x8xf32>, vector<1x8xf32>, vector<1x8xf32> -> vector<1x32xf32>
    %42 = vector.broadcast %40 : vector<1x32xf32> to vector<162x32xf32>
    %43 = arith.mulf %5, %42 : vector<162x32xf32>
    %44 = vector.broadcast %41 : vector<1x32xf32> to vector<162x32xf32>
    %45 = arith.addf %43, %44 : vector<162x32xf32>
    %cst_14 = arith.constant 0.000000e+00 : f32
    %46 = vector.broadcast %cst_14 : f32 to vector<162x32xf32>
    %47 = arith.maximumf %45, %46 : vector<162x32xf32>
    %c0_15 = arith.constant 0 : index
    %c0_16 = arith.constant 0 : index
    %48 = vector.load %arg6[%c0_15, %c0_16] : memref<162x32xf32, #tpu.memory_space<vmem>>, vector<162x32xf32>
    tpu.vector_store %arg6[%c0_15, %c0_16], %47 {strides = array<i32>} : memref<162x32xf32, #tpu.memory_space<vmem>>, vector<162x32xf32>,
    return
  }
  func.func @transform_0(%arg0: i32) -> (i32, i32) {
    %c0_i32 = arith.constant 0 : i32
    %c0_i32_0 = arith.constant 0 : i32
    %c0_i32_1 = arith.constant 0 : i32
    return %c0_i32, %c0_i32_0 : i32, i32
  }
  func.func @transform_1(%arg0: i32) -> (i32, i32) {
    %c0_i32 = arith.constant 0 : i32
    %c0_i32_0 = arith.constant 0 : i32
    %c0_i32_1 = arith.constant 0 : i32
    return %c0_i32, %c0_i32_0 : i32, i32
  }
  func.func @transform_2(%arg0: i32) -> (i32, i32) {
    %c0_i32 = arith.constant 0 : i32
    %c0_i32_0 = arith.constant 0 : i32
    %c0_i32_1 = arith.constant 0 : i32
    return %c0_i32, %c0_i32_0 : i32, i32
  }
  func.func @transform_3(%arg0: i32) -> (i32, i32) {
    %c0_i32 = arith.constant 0 : i32
    %c0_i32_0 = arith.constant 0 : i32
    %c0_i32_1 = arith.constant 0 : i32
    return %c0_i32, %c0_i32_0 : i32, i32
  }
  func.func @transform_4(%arg0: i32) -> (i32, i32) {
    %c0_i32 = arith.constant 0 : i32
    %c0_i32_0 = arith.constant 0 : i32
    %c0_i32_1 = arith.constant 0 : i32
    return %c0_i32, %c0_i32_0 : i32, i32
  }
  func.func @transform_5(%arg0: i32) -> (i32, i32) {
    %c0_i32 = arith.constant 0 : i32
    %c0_i32_0 = arith.constant 0 : i32
    %c0_i32_1 = arith.constant 0 : i32
    return %c0_i32, %c0_i32_0 : i32, i32
  }
}

module attributes {stable_mosaic.version = 11 : i64} {
  func.func @_matmul_bias_kernel(%arg0: i32, %arg1: memref<384x72xbf16, #tpu.memory_space<vmem>>, %arg2: memref<72x32xbf16, #tpu.memory_space<vmem>>, %arg3: memref<1x32xf32, #tpu.memory_space<vmem>>, %arg4: memref<384x32xf32, #tpu.memory_space<vmem>>) attributes {dimension_semantics = [#tpu.dimension_semantics<parallel>], iteration_bounds = array<i64: 2>, scalar_prefetch = 0 : i64, scratch_operands = 0 : i64, tpu.core_type = #tpu.core_type<tc>, window_params = [{transform_indices = @transform_0, window_bounds = array<i64: 384, 72>}, {pipeline_mode = #tpu.pipeline_mode<synchronous>, transform_indices = @transform_1, window_bounds = array<i64: 72, 32>}, {pipeline_mode = #tpu.pipeline_mode<synchronous>, transform_indices = @transform_2, window_bounds = array<i64: 1, 32>}, {transform_indices = @transform_3, window_bounds = array<i64: 384, 32>}]} {
    %c0 = arith.constant 0 : index
    %c0_0 = arith.constant 0 : index
    %0 = vector.load %arg1[%c0, %c0_0] : memref<384x72xbf16, #tpu.memory_space<vmem>>, vector<384x72xbf16>
    %c0_1 = arith.constant 0 : index
    %c0_2 = arith.constant 0 : index
    %1 = vector.load %arg2[%c0_1, %c0_2] : memref<72x32xbf16, #tpu.memory_space<vmem>>, vector<72x32xbf16>
    %cst = arith.constant dense<0.000000e+00> : vector<384x32xf32>
    %2 = tpu.matmul %0, %1, %cst {dimension_numbers = #tpu.dot_dimension_numbers<[1], [0], [0], [1], [0, 0, 1, 1], [], []>} : vector<384x72xbf16>, vector<72x32xbf16>, vector<384x32xf32> -> vector<384x32xf32>
    %c0_3 = arith.constant 0 : index
    %c0_4 = arith.constant 0 : index
    %3 = vector.load %arg3[%c0_3, %c0_4] : memref<1x32xf32, #tpu.memory_space<vmem>>, vector<1x32xf32>
    %4 = vector.broadcast %3 : vector<1x32xf32> to vector<384x32xf32>
    %5 = arith.addf %2, %4 : vector<384x32xf32>
    %c0_5 = arith.constant 0 : index
    %c0_6 = arith.constant 0 : index
    %6 = vector.load %arg4[%c0_5, %c0_6] : memref<384x32xf32, #tpu.memory_space<vmem>>, vector<384x32xf32>
    tpu.vector_store %arg4[%c0_5, %c0_6], %5 {strides = array<i32>} : memref<384x32xf32, #tpu.memory_space<vmem>>, vector<384x32xf32>,
    return
  }
  func.func @transform_0(%arg0: i32) -> (i32, i32) {
    %c0_i32 = arith.constant 0 : i32
    %c0_i32_0 = arith.constant 0 : i32
    return %arg0, %c0_i32 : i32, i32
  }
  func.func @transform_1(%arg0: i32) -> (i32, i32) {
    %c0_i32 = arith.constant 0 : i32
    %c0_i32_0 = arith.constant 0 : i32
    %c0_i32_1 = arith.constant 0 : i32
    return %c0_i32, %c0_i32_0 : i32, i32
  }
  func.func @transform_2(%arg0: i32) -> (i32, i32) {
    %c0_i32 = arith.constant 0 : i32
    %c0_i32_0 = arith.constant 0 : i32
    %c0_i32_1 = arith.constant 0 : i32
    return %c0_i32, %c0_i32_0 : i32, i32
  }
  func.func @transform_3(%arg0: i32) -> (i32, i32) {
    %c0_i32 = arith.constant 0 : i32
    %c0_i32_0 = arith.constant 0 : i32
    return %arg0, %c0_i32 : i32, i32
  }
}

</mosaic_0001>

<llo_original>
// kernel: tile.13
$region0: #{tile.13}
  #allocation0 [shape = 's32[1]{0}', space=sflag, size = 0x4, scoped, tag = 'scoped memory for tile.13']
  %s0 = inlined_call_operand.vmem [shape: f32[8], index: 0, kind: input, shape index: {}]
  %s1 = inlined_call_operand.vmem [shape: f32[4,8], index: 1, kind: output, shape index: {}]
  // Predicated region
  $region2: #{tile.13} parent=0 // pred_check
    _
  $region3: #{tile.13} parent=0 // pred_check_branch
    %3 = sbr.rel (0) target = $region5
  $region4: #{tile.13} parent=0 // pred_region
    _
  $region5: #{tile.13} parent=0 // pred_fallthru
    _
  %v4 = vld [vmem:[%s0] ss:$0 sm:$0xff]
  %5 = vst [vmem:[%s1] sm:$0xf] %v4

// kernel: tile.14
$region0: #{tile.14}
  %s0 = inlined_call_operand.vmem [shape: f32[4,8], index: 0, kind: input, shape index: {}]
  %s1 = inlined_call_operand.vmem [shape: f32[1,32], index: 1, kind: output, shape index: {}]
  $region1: #{tile.14} parent=0
    #allocation0 [shape = 'u8[4096]{0}', space=vmem, size = 0x1000, scoped, tag = 'scoped mem for output reshape']
    #allocation1 [shape = 'u8[4096]{0}', space=vmem, size = 0x1000, scoped, tag = 'scoped mem for input reshape']
    %s3 = sshllo.u32 0, 4
    %v4 = vld [vmem:[%s0] sm:%s3]
    %5 = vst [vmem:[#allocation1] sm:%s3] %v4
    %v6 = vld [vmem:[#allocation1] sm:$0x1]
    %vm7 = vcmask 64512
    %8 = vst.msk [vmem:[#allocation0] sm:$0x1] %vm7, %v6
    %s9 = scalar_lea.vmem [#allocation1], 3
    %v10 = vld [vmem:[%s9] sm:$0x1]
    %11 = vrot.lane.b32.xlu0 %v10, 24
    %v12 = vpop.permute.xlu0 %11
    %vm13 = vcmask 261312
    %14 = vst.msk [vmem:[#allocation0] sm:$0x1] %vm13, %v12
    %s15 = scalar_lea.vmem [#allocation1], 2
    %v16 = vld [vmem:[%s15] sm:$0x1]
    %17 = vrot.lane.b32.xlu0 %v16, 16
    %v18 = vpop.permute.xlu0 %17
    %vm19 = vcmask 195712
    %20 = vst.msk [vmem:[#allocation0] sm:$0x1] %vm19, %v18
    %s21 = scalar_lea.vmem [#allocation1], 1
    %v22 = vld [vmem:[%s21] sm:$0x1]
    %23 = vrot.lane.b32.xlu0 %v22, 8
    %v24 = vpop.permute.xlu0 %23
    %vm25 = vcmask 130112
    %26 = vst.msk [vmem:[#allocation0] sm:$0x1] %vm25, %v24
    %s28 = sshllo.u32 0, 1
    %v30 = vld [vmem:[#allocation0] sm:%s28]
    %s31 = sshllo.u32 0, 1
    %32 = vst [vmem:[%s1] sm:%s31] %v30

// kernel: decoder_forward.2
$region0: #{decoder_forward.2}
  #allocation0 [shape = 'u32[]', space=smem, size = 0x4, offset = 0x4, fixed_abs, tag = 'smem constant byte address 0x4 - core index']
  #allocation1 [shape = 'u32[144,128]{1,0:T(1,128)}', space=vmem, size = 0x12000, scoped, tag = 'internal scratch']
  %s0 = inlined_call_operand.vmem [shape: bf16[162,144], index: 0, kind: input, shape index: {}]
  %s1 = inlined_call_operand.vmem [shape: bf16[144,32], index: 1, kind: input, shape index: {}]
  %s2 = inlined_call_operand.vmem [shape: f32[1,32], index: 2, kind: input, shape index: {}]
  %s3 = inlined_call_operand.vmem [shape: f32[1,8], index: 3, kind: input, shape index: {}]
  %s4 = inlined_call_operand.vmem [shape: f32[1,8], index: 4, kind: input, shape index: {}]
  %s5 = inlined_call_operand.vmem [shape: f32[162,32], index: 5, kind: output, shape index: {}]
  %s6 = sld [smem:[#allocation0]]
  $region30: #{decoder_forward.2} parent=0
    _
  %s8 = ssub.s32 1, %s6
  %s9 = scalar_select 0, %s8, %s6
  // Predicated region
  $region2: #{decoder_forward.2} parent=0 // pred_check
    _
  $region3: #{decoder_forward.2} parent=0 // pred_check_branch
    %11 = sbr.rel (0) target = $region5
  $region4: #{decoder_forward.2} parent=0 // pred_region
    _
  $region5: #{decoder_forward.2} parent=0 // pred_fallthru
    _
  // Predicated region
  $region6: #{decoder_forward.2} parent=0 // pred_check
    _
  $region7: #{decoder_forward.2} parent=0 // pred_check_branch
    %13 = sbr.rel (0) target = $region9
  $region8: #{decoder_forward.2} parent=0 // pred_region
    _
  $region9: #{decoder_forward.2} parent=0 // pred_fallthru
    _
  // Predicated region
  $region10: #{decoder_forward.2} parent=0 // pred_check
    _
  $region11: #{decoder_forward.2} parent=0 // pred_check_branch
    %15 = sbr.rel (0) target = $region13
  $region12: #{decoder_forward.2} parent=0 // pred_region
    _
  $region13: #{decoder_forward.2} parent=0 // pred_fallthru
    _
  // Predicated region
  $region14: #{decoder_forward.2} parent=0 // pred_check
    _
  $region15: #{decoder_forward.2} parent=0 // pred_check_branch
    %17 = sbr.rel (0) target = $region17
  $region16: #{decoder_forward.2} parent=0 // pred_region
    _
  $region17: #{decoder_forward.2} parent=0 // pred_fallthru
    _
  // Predicated region
  $region18: #{decoder_forward.2} parent=0 // pred_check
    _
  $region19: #{decoder_forward.2} parent=0 // pred_check_branch
    %19 = sbr.rel (0) target = $region21
  $region20: #{decoder_forward.2} parent=0 // pred_region
    _
  $region21: #{decoder_forward.2} parent=0 // pred_fallthru
    _
  %v21 = vld [vmem:[%s0] sm:$0xff]
  %v22 = vld [vmem:[%s0 + $0x8] sm:$0xff]
  %v23 = vld [vmem:[%s0 + $0x10] sm:$0xff]
  %v24 = vld [vmem:[%s0 + $0x18] sm:$0xff]
  %v25 = vld [vmem:[%s0 + $0x20] sm:$0xff]
  %v26 = vld [vmem:[%s0 + $0x28] sm:$0xff]
  %v27 = vld [vmem:[%s0 + $0x30] sm:$0xff]
  %v28 = vld [vmem:[%s0 + $0x38] sm:$0xff]
  %v29 = vld [vmem:[%s0 + $0x40] sm:$0xff]
  %v30 = vld [vmem:[%s0 + $0x48] sm:$0xff]
  %v31 = vld [vmem:[%s0 + $0x50] sm:$0xff]
  %v32 = vld [vmem:[%s0 + $0x58] sm:$0xff]
  %v33 = vld [vmem:[%s0 + $0x60] sm:$0xff]
  %v34 = vld [vmem:[%s0 + $0x68] sm:$0xff]
  %v35 = vld [vmem:[%s0 + $0x70] sm:$0xff]
  %v36 = vld [vmem:[%s0 + $0x78] sm:$0xff]
  %v37 = vld [vmem:[%s0 + $0x80] sm:$0xff]
  %v38 = vld [vmem:[%s0 + $0x88] sm:$0xff]
  %v39 = vld [vmem:[%s0 + $0x90] sm:$0xff]
  %v40 = vld [vmem:[%s0 + $0x98] sm:$0xff]
  %v41 = vld [vmem:[%s0 + $0xa0] sm:$0x11]
  %v42 = vld [vmem:[%s1] sm:$0xf]
  %v43 = vld [vmem:[%s1 + $0x4] sm:$0xf]
  %v44 = vld [vmem:[%s1 + $0x8] sm:$0xf]
  %v45 = vld [vmem:[%s1 + $0xc] sm:$0xf]
  %v46 = vld [vmem:[%s1 + $0x10] sm:$0xf]
  %v47 = vld [vmem:[%s1 + $0x14] sm:$0xf]
  %v48 = vld [vmem:[%s1 + $0x18] sm:$0xf]
  %v49 = vld [vmem:[%s1 + $0x1c] sm:$0xf]
  %v50 = vld [vmem:[%s1 + $0x20] sm:$0xf]
  %v51 = vld [vmem:[%s1 + $0x24] sm:$0xf]
  %v52 = vld [vmem:[%s1 + $0x28] sm:$0xf]
  %v53 = vld [vmem:[%s1 + $0x2c] sm:$0xf]
  %v54 = vld [vmem:[%s1 + $0x30] sm:$0xf]
  %v55 = vld [vmem:[%s1 + $0x34] sm:$0xf]
  %v56 = vld [vmem:[%s1 + $0x38] sm:$0xf]
  %v57 = vld [vmem:[%s1 + $0x3c] sm:$0xf]
  %v58 = vld [vmem:[%s1 + $0x40] sm:$0xf]
  %v59 = vld [vmem:[%s1 + $0x44] sm:$0xf]
  %v60 = vld [vmem:[%s2] sm:$0x1]
  %v62 = vlaneseq
  %v63 = vshrl.u32 %v62, 7
  %v64 = vsub.s32 0, %v63
  %v65 = vrot.slane %v60, %v64
  %v88 = vunpack.c.l.b16 %v21
  %v89 = vunpack.c.h.b16 %v21
  %v90 = vunpack.c.l.b16 %v22
  %v91 = vunpack.c.h.b16 %v22
  %v92 = vunpack.c.l.b16 %v23
  %v93 = vunpack.c.h.b16 %v23
  %v94 = vunpack.c.l.b16 %v24
  %v95 = vunpack.c.h.b16 %v24
  %v96 = vunpack.c.l.b16 %v25
  %v97 = vunpack.c.h.b16 %v25
  %v98 = vunpack.c.l.b16 %v26
  %v99 = vunpack.c.h.b16 %v26
  %v100 = vunpack.c.l.b16 %v27
  %v101 = vunpack.c.h.b16 %v27
  %v102 = vunpack.c.l.b16 %v28
  %v103 = vunpack.c.h.b16 %v28
  %v104 = vunpack.c.l.b16 %v29
  %v105 = vunpack.c.h.b16 %v29
  %v106 = vunpack.c.l.b16 %v30
  %v107 = vunpack.c.h.b16 %v30
  %v108 = vunpack.c.l.b16 %v31
  %v109 = vunpack.c.h.b16 %v31
  %v110 = vunpack.c.l.b16 %v32
  %v111 = vunpack.c.h.b16 %v32
  %v112 = vunpack.c.l.b16 %v33
  %v113 = vunpack.c.h.b16 %v33
  %v114 = vunpack.c.l.b16 %v34
  %v115 = vunpack.c.h.b16 %v34
  %v116 = vunpack.c.l.b16 %v35
  %v117 = vunpack.c.h.b16 %v35
  %v118 = vunpack.c.l.b16 %v36
  %v119 = vunpack.c.h.b16 %v36
  %v120 = vunpack.c.l.b16 %v37
  %v121 = vunpack.c.h.b16 %v37
  %v122 = vunpack.c.l.b16 %v38
  %v123 = vunpack.c.h.b16 %v38
  %v124 = vunpack.c.l.b16 %v39
  %v125 = vunpack.c.h.b16 %v39
  %v126 = vunpack.c.l.b16 %v40
  %v127 = vunpack.c.h.b16 %v40
  %v128 = vunpack.c.l.b16 %v41
  %v129 = vunpack.c.h.b16 %v41
  %v130 = vpack.c.b16 %v90, %v88
  %v131 = vpack.c.b16 %v91, %v89
  %v132 = vpack.c.b16 %v94, %v92
  %v133 = vpack.c.b16 %v95, %v93
  %v134 = vpack.c.b16 %v98, %v96
  %v135 = vpack.c.b16 %v99, %v97
  %v136 = vpack.c.b16 %v102, %v100
  %v137 = vpack.c.b16 %v103, %v101
  %v138 = vpack.c.b16 %v106, %v104
  %v139 = vpack.c.b16 %v107, %v105
  %v140 = vpack.c.b16 %v110, %v108
  %v141 = vpack.c.b16 %v111, %v109
  %v142 = vpack.c.b16 %v114, %v112
  %v143 = vpack.c.b16 %v115, %v113
  %v144 = vpack.c.b16 %v118, %v116
  %v145 = vpack.c.b16 %v119, %v117
  %v146 = vpack.c.b16 %v122, %v120
  %v147 = vpack.c.b16 %v123, %v121
  %v148 = vpack.c.b16 %v126, %v124
  %v149 = vpack.c.b16 %v127, %v125
  %v150 = vpack.c.b16 %v128, %v128
  %v151 = vpack.c.b16 %v129, %v129
  %v181 = vunpack.c.l.b16 %v42
  %v182 = vunpack.c.l.b16 %v43
  %v183 = vunpack.c.l.b16 %v44
  %v184 = vunpack.c.l.b16 %v45
  %v185 = vunpack.c.l.b16 %v46
  %v186 = vunpack.c.l.b16 %v47
  %v187 = vunpack.c.l.b16 %v48
  %v188 = vunpack.c.l.b16 %v49
  %v189 = vunpack.c.l.b16 %v50
  %v190 = vunpack.c.l.b16 %v51
  %v191 = vunpack.c.l.b16 %v52
  %v192 = vunpack.c.l.b16 %v53
  %v193 = vunpack.c.l.b16 %v54
  %v194 = vunpack.c.l.b16 %v55
  %v195 = vunpack.c.l.b16 %v56
  %v196 = vunpack.c.l.b16 %v57
  %v197 = vunpack.c.l.b16 %v58
  %v198 = vunpack.c.l.b16 %v59
  %v199 = vpack.c.b16 %v182, %v181
  %v200 = vpack.c.b16 %v184, %v183
  %v201 = vpack.c.b16 %v186, %v185
  %v202 = vpack.c.b16 %v188, %v187
  %v203 = vpack.c.b16 %v190, %v189
  %v204 = vpack.c.b16 %v192, %v191
  %v205 = vpack.c.b16 %v194, %v193
  %v206 = vpack.c.b16 %v196, %v195
  %v207 = vpack.c.b16 %v198, %v197
  %vm217 = vcmask 130048
  %v219 = vsel %vm217, %v131, 0
  %v222 = vsel %vm217, %v133, 0
  %v225 = vsel %vm217, %v135, 0
  %v228 = vsel %vm217, %v137, 0
  %v231 = vsel %vm217, %v139, 0
  %v234 = vsel %vm217, %v141, 0
  %v237 = vsel %vm217, %v143, 0
  %v240 = vsel %vm217, %v145, 0
  %v243 = vsel %vm217, %v147, 0
  %v246 = vsel %vm217, %v149, 0
  %v249 = vsel %vm217, %v151, 0
  %251 = vmatprep.subr.bf16.mxu0 0
  %252 = vmatpush1.bf16.msra.mxu0 %v199
  %253 = vmatprep.subr.bf16.mxu0 0
  %254 = vmatpush1.bf16.msra.mxu0 %v200
  %255 = vmatprep.subr.bf16.mxu0 0
  %256 = vmatpush1.bf16.msra.mxu0 %v201
  %257 = vmatprep.subr.bf16.mxu0 0
  %258 = vmatpush1.bf16.msra.mxu0 %v202
  %259 = vmatprep.subr.bf16.mxu0 0
  %260 = vmatpush1.bf16.msra.mxu0 %v203
  %261 = vmatprep.subr.bf16.mxu0 0
  %262 = vmatpush1.bf16.msra.mxu0 %v204
  %263 = vmatprep.subr.bf16.mxu0 0
  %264 = vmatpush1.bf16.msra.mxu0 %v205
  %265 = vmatprep.subr.bf16.mxu0 0
  %266 = vmatpush1.bf16.msra.mxu0 %v206
  %267 = vmatprep.subr.bf16.mxu0 0
  %268 = vmatpush1.bf16.msra.mxu0 %v207
  %269 = vmatprep.subr.bf16.mxu0 0
  %270 = vmatpush1.bf16.msra.mxu0 0
  %271 = vmatprep.subr.bf16.mxu0 0
  %272 = vmatpush1.bf16.msra.mxu0 0
  %273 = vmatprep.subr.bf16.mxu0 0
  %274 = vmatpush1.bf16.msra.mxu0 0
  %275 = vmatprep.subr.bf16.mxu0 0
  %276 = vmatpush1.bf16.msra.mxu0 0
  %277 = vmatprep.subr.bf16.mxu0 0
  %278 = vmatpush1.bf16.msra.mxu0 0
  %279 = vmatprep.subr.bf16.mxu0 0
  %280 = vmatpush1.bf16.msra.mxu0 0
  %281 = vmatprep.subr.bf16.mxu0 0
  %282 = vmatpush1.bf16.msra.mxu0 0
  %283 = vmatprep.mubr.bf16.mxu0 %v219
  %284 = vmatmul.mubr.bf16.gmra.mrb[0].mxu0 %v130
  %v285 = vpop.f32.mrb[0].mxu0
  %v286 = vadd.f32 %v65, %v285
  %v287 = vpop.f32.mrb[0].mxu0
  %v288 = vpop.f32.mrb[0].mxu0
  %v289 = vadd.f32 %v65, %v288
  %v290 = vpop.f32.mrb[0].mxu0
  %291 = vmatprep.mubr.bf16.mxu0 %v222
  %292 = vmatmul.mubr.bf16.gmra.mrb[0].mxu0 %v132
  %v293 = vpop.f32.mrb[0].mxu0
  %v294 = vadd.f32 %v65, %v293
  %v295 = vpop.f32.mrb[0].mxu0
  %v296 = vpop.f32.mrb[0].mxu0
  %v297 = vadd.f32 %v65, %v296
  %v298 = vpop.f32.mrb[0].mxu0
  %299 = vmatprep.mubr.bf16.mxu0 %v225
  %300 = vmatmul.mubr.bf16.gmra.mrb[0].mxu0 %v134
  %v301 = vpop.f32.mrb[0].mxu0
  %v302 = vadd.f32 %v65, %v301
  %v303 = vpop.f32.mrb[0].mxu0
  %v304 = vpop.f32.mrb[0].mxu0
  %v305 = vadd.f32 %v65, %v304
  %v306 = vpop.f32.mrb[0].mxu0
  %307 = vmatprep.mubr.bf16.mxu0 %v228
  %308 = vmatmul.mubr.bf16.gmra.mrb[0].mxu0 %v136
  %v309 = vpop.f32.mrb[0].mxu0
  %v310 = vadd.f32 %v65, %v309
  %v311 = vpop.f32.mrb[0].mxu0
  %v312 = vpop.f32.mrb[0].mxu0
  %v313 = vadd.f32 %v65, %v312
  %v314 = vpop.f32.mrb[0].mxu0
  %315 = vmatprep.mubr.bf16.mxu0 %v231
  %316 = vmatmul.mubr.bf16.gmra.mrb[0].mxu0 %v138
  %v317 = vpop.f32.mrb[0].mxu0
  %v318 = vadd.f32 %v65, %v317
  %v319 = vpop.f32.mrb[0].mxu0
  %v320 = vpop.f32.mrb[0].mxu0
  %v321 = vadd.f32 %v65, %v320
  %v322 = vpop.f32.mrb[0].mxu0
  %323 = vmatprep.mubr.bf16.mxu0 %v234
  %324 = vmatmul.mubr.bf16.gmra.mrb[0].mxu0 %v140
  %v325 = vpop.f32.mrb[0].mxu0
  %v326 = vadd.f32 %v65, %v325
  %v327 = vpop.f32.mrb[0].mxu0
  %v328 = vpop.f32.mrb[0].mxu0
  %v329 = vadd.f32 %v65, %v328
  %v330 = vpop.f32.mrb[0].mxu0
  %331 = vmatprep.mubr.bf16.mxu0 %v237
  %332 = vmatmul.mubr.bf16.gmra.mrb[0].mxu0 %v142
  %v333 = vpop.f32.mrb[0].mxu0
  %v334 = vadd.f32 %v65, %v333
  %v335 = vpop.f32.mrb[0].mxu0
  %v336 = vpop.f32.mrb[0].mxu0
  %v337 = vadd.f32 %v65, %v336
  %v338 = vpop.f32.mrb[0].mxu0
  %339 = vmatprep.mubr.bf16.mxu0 %v240
  %340 = vmatmul.mubr.bf16.gmra.mrb[0].mxu0 %v144
  %v341 = vpop.f32.mrb[0].mxu0
  %v342 = vadd.f32 %v65, %v341
  %v343 = vpop.f32.mrb[0].mxu0
  %v344 = vpop.f32.mrb[0].mxu0
  %v345 = vadd.f32 %v65, %v344
  %v346 = vpop.f32.mrb[0].mxu0
  %347 = vmatprep.mubr.bf16.mxu0 %v243
  %348 = vmatmul.mubr.bf16.gmra.mrb[0].mxu0 %v146
  %v349 = vpop.f32.mrb[0].mxu0
  %v350 = vadd.f32 %v65, %v349
  %v351 = vpop.f32.mrb[0].mxu0
  %v352 = vpop.f32.mrb[0].mxu0
  %v353 = vadd.f32 %v65, %v352
  %v354 = vpop.f32.mrb[0].mxu0
  %355 = vmatprep.mubr.bf16.mxu0 %v246
  %356 = vmatmul.mubr.bf16.gmra.mrb[0].mxu0 %v148
  %v357 = vpop.f32.mrb[0].mxu0
  %v358 = vadd.f32 %v65, %v357
  %v359 = vpop.f32.mrb[0].mxu0
  %v360 = vpop.f32.mrb[0].mxu0
  %v361 = vadd.f32 %v65, %v360
  %v362 = vpop.f32.mrb[0].mxu0
  %363 = vmatprep.mubr.bf16.mxu0 %v249
  %364 = vmatmul.mubr.bf16.gmra.mrb[0].mxu0 %v150
  %v365 = vpop.f32.mrb[0].mxu0
  %v366 = vadd.f32 %v65, %v365
  %v367 = vpop.f32.mrb[0].mxu0
  %v368 = vpop.f32.mrb[0].mxu0
  %v369 = vpop.f32.mrb[0].mxu0
  %370 = vdwg.mxu0
  %vm371 = vcmask 261120
  %v372 = vsel %vm371, %v286, 0.0
  %v373 = vsel %vm371, %v289, 0.0
  %v374 = vadd.f32 %v372, %v373
  %v375 = vsel %vm371, %v294, 0.0
  %v376 = vadd.f32 %v374, %v375
  %v377 = vsel %vm371, %v297, 0.0
  %v378 = vadd.f32 %v376, %v377
  %v379 = vsel %vm371, %v302, 0.0
  %v380 = vadd.f32 %v378, %v379
  %v381 = vsel %vm371, %v305, 0.0
  %v382 = vadd.f32 %v380, %v381
  %v383 = vsel %vm371, %v310, 0.0
  %v384 = vadd.f32 %v382, %v383
  %v385 = vsel %vm371, %v313, 0.0
  %v386 = vadd.f32 %v384, %v385
  %v387 = vsel %vm371, %v318, 0.0
  %v388 = vadd.f32 %v386, %v387
  %v389 = vsel %vm371, %v321, 0.0
  %v390 = vadd.f32 %v388, %v389
  %v391 = vsel %vm371, %v326, 0.0
  %v392 = vadd.f32 %v390, %v391
  %v393 = vsel %vm371, %v329, 0.0
  %v394 = vadd.f32 %v392, %v393
  %v395 = vsel %vm371, %v334, 0.0
  %v396 = vadd.f32 %v394, %v395
  %v397 = vsel %vm371, %v337, 0.0
  %v398 = vadd.f32 %v396, %v397
  %v399 = vsel %vm371, %v342, 0.0
  %v400 = vadd.f32 %v398, %v399
  %v401 = vsel %vm371, %v345, 0.0
  %v402 = vadd.f32 %v400, %v401
  %v403 = vsel %vm371, %v350, 0.0
  %v404 = vadd.f32 %v402, %v403
  %v405 = vsel %vm371, %v353, 0.0
  %v406 = vadd.f32 %v404, %v405
  %v407 = vsel %vm371, %v358, 0.0
  %v408 = vadd.f32 %v406, %v407
  %v409 = vsel %vm371, %v361, 0.0
  %v410 = vadd.f32 %v408, %v409
  %vm411 = vcmask 254976
  %v412 = vsel %vm411, %v366, 0.0
  %v413 = vadd.f32 %v410, %v412
  %v414 = vrot.slane %v413, 4
  %v415 = vadd.f32 %v413, %v414
  %v416 = vrot.slane %v415, 2
  %v417 = vadd.f32 %v415, %v416
  %v418 = vrot.slane %v417, 1
  %v419 = vadd.f32 %v417, %v418
  %421 = vrot.lane.b32.xlu0 %v419, 120
  %v422 = vpop.permute.xlu0 %421
  %v424 = vadd.f32 %v419, %v422
  %425 = vrot.lane.b32.xlu0 %v419, 112
  %v426 = vpop.permute.xlu0 %425
  %v428 = vadd.f32 %v424, %v426
  %429 = vrot.lane.b32.xlu0 %v419, 104
  %v430 = vpop.permute.xlu0 %429
  %v432 = vadd.f32 %v428, %v430
  %v433 = vrcp.pop 648.0
  %v434 = vmul.f32 %v432, %v433
  %436 = vrot.lane.b32.xlu0 %v434, 8
  %v437 = vpop.permute.xlu0 %436
  %439 = vrot.lane.b32.xlu0 %v434, 16
  %v440 = vpop.permute.xlu0 %439
  %442 = vrot.lane.b32.xlu0 %v434, 24
  %v443 = vpop.permute.xlu0 %442
  %vm445 = vcmask 64512
  %v446 = vsel %vm445, %v434, %v437
  %v447 = vsel %vm217, %v446, %v440
  %vm448 = vcmask 195584
  %v449 = vsel %vm448, %v447, %v443
  %v450 = vlaneseq
  %v451 = vshrl.u32 %v450, 7
  %v452 = vsub.s32 0, %v451
  %v453 = vrot.slane %v449, %v452
  %v454 = vsub.f32 %v286, %v453
  %v455 = vsub.f32 %v289, %v453
  %v456 = vsub.f32 %v294, %v453
  %v457 = vsub.f32 %v297, %v453
  %v458 = vsub.f32 %v302, %v453
  %v459 = vsub.f32 %v305, %v453
  %v460 = vsub.f32 %v310, %v453
  %v461 = vsub.f32 %v313, %v453
  %v462 = vsub.f32 %v318, %v453
  %v463 = vsub.f32 %v321, %v453
  %v464 = vsub.f32 %v326, %v453
  %v465 = vsub.f32 %v329, %v453
  %v466 = vsub.f32 %v334, %v453
  %v467 = vsub.f32 %v337, %v453
  %v468 = vsub.f32 %v342, %v453
  %v469 = vsub.f32 %v345, %v453
  %v470 = vsub.f32 %v350, %v453
  %v471 = vsub.f32 %v353, %v453
  %v472 = vsub.f32 %v358, %v453
  %v473 = vsub.f32 %v361, %v453
  %v474 = vsub.f32 %v366, %v453
  %v475 = vmul.f32 %v454, %v454
  %v476 = vmul.f32 %v455, %v455
  %v477 = vmul.f32 %v456, %v456
  %v478 = vmul.f32 %v457, %v457
  %v479 = vmul.f32 %v458, %v458
  %v480 = vmul.f32 %v459, %v459
  %v481 = vmul.f32 %v460, %v460
  %v482 = vmul.f32 %v461, %v461
  %v483 = vmul.f32 %v462, %v462
  %v484 = vmul.f32 %v463, %v463
  %v485 = vmul.f32 %v464, %v464
  %v486 = vmul.f32 %v465, %v465
  %v487 = vmul.f32 %v466, %v466
  %v488 = vmul.f32 %v467, %v467
  %v489 = vmul.f32 %v468, %v468
  %v490 = vmul.f32 %v469, %v469
  %v491 = vmul.f32 %v470, %v470
  %v492 = vmul.f32 %v471, %v471
  %v493 = vmul.f32 %v472, %v472
  %v494 = vmul.f32 %v473, %v473
  %v495 = vmul.f32 %v474, %v474
  %v496 = vsel %vm371, %v475, 0.0
  %v497 = vsel %vm371, %v476, 0.0
  %v498 = vadd.f32 %v496, %v497
  %v499 = vsel %vm371, %v477, 0.0
  %v500 = vadd.f32 %v498, %v499
  %v501 = vsel %vm371, %v478, 0.0
  %v502 = vadd.f32 %v500, %v501
  %v503 = vsel %vm371, %v479, 0.0
  %v504 = vadd.f32 %v502, %v503
  %v505 = vsel %vm371, %v480, 0.0
  %v506 = vadd.f32 %v504, %v505
  %v507 = vsel %vm371, %v481, 0.0
  %v508 = vadd.f32 %v506, %v507
  %v509 = vsel %vm371, %v482, 0.0
  %v510 = vadd.f32 %v508, %v509
  %v511 = vsel %vm371, %v483, 0.0
  %v512 = vadd.f32 %v510, %v511
  %v513 = vsel %vm371, %v484, 0.0
  %v514 = vadd.f32 %v512, %v513
  %v515 = vsel %vm371, %v485, 0.0
  %v516 = vadd.f32 %v514, %v515
  %v517 = vsel %vm371, %v486, 0.0
  %v518 = vadd.f32 %v516, %v517
  %v519 = vsel %vm371, %v487, 0.0
  %v520 = vadd.f32 %v518, %v519
  %v521 = vsel %vm371, %v488, 0.0
  %v522 = vadd.f32 %v520, %v521
  %v523 = vsel %vm371, %v489, 0.0
  %v524 = vadd.f32 %v522, %v523
  %v525 = vsel %vm371, %v490, 0.0
  %v526 = vadd.f32 %v524, %v525
  %v527 = vsel %vm371, %v491, 0.0
  %v528 = vadd.f32 %v526, %v527
  %v529 = vsel %vm371, %v492, 0.0
  %v530 = vadd.f32 %v528, %v529
  %v531 = vsel %vm371, %v493, 0.0
  %v532 = vadd.f32 %v530, %v531
  %v533 = vsel %vm371, %v494, 0.0
  %v534 = vadd.f32 %v532, %v533
  %v535 = vsel %vm411, %v495, 0.0
  %v536 = vadd.f32 %v534, %v535
  %v537 = vrot.slane %v536, 4
  %v538 = vadd.f32 %v536, %v537
  %v539 = vrot.slane %v538, 2
  %v540 = vadd.f32 %v538, %v539
  %v541 = vrot.slane %v540, 1
  %v542 = vadd.f32 %v540, %v541
  %544 = vrot.lane.b32.xlu0 %v542, 120
  %v545 = vpop.permute.xlu0 %544
  %v547 = vadd.f32 %v542, %v545
  %548 = vrot.lane.b32.xlu0 %v542, 112
  %v549 = vpop.permute.xlu0 %548
  %v551 = vadd.f32 %v547, %v549
  %552 = vrot.lane.b32.xlu0 %v542, 104
  %v553 = vpop.permute.xlu0 %552
  %v555 = vadd.f32 %v551, %v553
  %v556 = vmul.f32 %v555, %v433
  %v557 = vadd.f32 %v556, 1e-05
  %v558 = vrsqrt.pop %v557
  %v559 = vld [vmem:[%s3] sm:$0x1]
  %v560 = vmul.f32 %v558, %v559
  %v561 = vld [vmem:[%s4] sm:$0x1]
  %v562 = vmul.f32 %v434, %v560
  %v563 = vsub.f32 %v561, %v562
  %565 = vrot.lane.b32.xlu0 %v560, 8
  %v566 = vpop.permute.xlu0 %565
  %568 = vrot.lane.b32.xlu0 %v560, 16
  %v569 = vpop.permute.xlu0 %568
  %571 = vrot.lane.b32.xlu0 %v560, 24
  %v572 = vpop.permute.xlu0 %571
  %v574 = vsel %vm445, %v560, %v566
  %v575 = vsel %vm217, %v574, %v569
  %v576 = vsel %vm448, %v575, %v572
  %v578 = vlaneseq
  %v579 = vshrl.u32 %v578, 7
  %v580 = vsub.s32 0, %v579
  %v581 = vrot.slane %v563, %v580
  %582 = vrot.lane.b32.xlu0 %v581, 8
  %v583 = vpop.permute.xlu0 %582
  %585 = vrot.lane.b32.xlu0 %v581, 16
  %v586 = vpop.permute.xlu0 %585
  %588 = vrot.lane.b32.xlu0 %v581, 24
  %v589 = vpop.permute.xlu0 %588
  %v591 = vsel %vm445, %v563, %v583
  %v592 = vsel %vm217, %v591, %v586
  %v593 = vsel %vm448, %v592, %v589
  %v594 = vlaneseq
  %v595 = vshrl.u32 %v594, 7
  %v596 = vsub.s32 0, %v595
  %v597 = vrot.slane %v576, %v596
  %v598 = vmul.f32 %v286, %v597
  %v599 = vmul.f32 %v289, %v597
  %v600 = vmul.f32 %v294, %v597
  %v601 = vmul.f32 %v297, %v597
  %v602 = vmul.f32 %v302, %v597
  %v603 = vmul.f32 %v305, %v597
  %v604 = vmul.f32 %v310, %v597
  %v605 = vmul.f32 %v313, %v597
  %v606 = vmul.f32 %v318, %v597
  %v607 = vmul.f32 %v321, %v597
  %v608 = vmul.f32 %v326, %v597
  %v609 = vmul.f32 %v329, %v597
  %v610 = vmul.f32 %v334, %v597
  %v611 = vmul.f32 %v337, %v597
  %v612 = vmul.f32 %v342, %v597
  %v613 = vmul.f32 %v345, %v597
  %v614 = vmul.f32 %v350, %v597
  %v615 = vmul.f32 %v353, %v597
  %v616 = vmul.f32 %v358, %v597
  %v617 = vmul.f32 %v361, %v597
  %v618 = vmul.f32 %v366, %v597
  %v619 = vlaneseq
  %v620 = vshrl.u32 %v619, 7
  %v621 = vsub.s32 0, %v620
  %v622 = vrot.slane %v593, %v621
  %v623 = vadd.f32 %v598, %v622
  %v624 = vadd.f32 %v599, %v622
  %v625 = vadd.f32 %v600, %v622
  %v626 = vadd.f32 %v601, %v622
  %v627 = vadd.f32 %v602, %v622
  %v628 = vadd.f32 %v603, %v622
  %v629 = vadd.f32 %v604, %v622
  %v630 = vadd.f32 %v605, %v622
  %v631 = vadd.f32 %v606, %v622
  %v632 = vadd.f32 %v607, %v622
  %v633 = vadd.f32 %v608, %v622
  %v634 = vadd.f32 %v609, %v622
  %v635 = vadd.f32 %v610, %v622
  %v636 = vadd.f32 %v611, %v622
  %v637 = vadd.f32 %v612, %v622
  %v638 = vadd.f32 %v613, %v622
  %v639 = vadd.f32 %v614, %v622
  %v640 = vadd.f32 %v615, %v622
  %v641 = vadd.f32 %v616, %v622
  %v642 = vadd.f32 %v617, %v622
  %v643 = vadd.f32 %v618, %v622
  %v644 = vmax.f32 %v623, 0.0
  %v645 = vmax.f32 %v624, 0.0
  %v646 = vmax.f32 %v625, 0.0
  %v647 = vmax.f32 %v626, 0.0
  %v648 = vmax.f32 %v627, 0.0
  %v649 = vmax.f32 %v628, 0.0
  %v650 = vmax.f32 %v629, 0.0
  %v651 = vmax.f32 %v630, 0.0
  %v652 = vmax.f32 %v631, 0.0
  %v653 = vmax.f32 %v632, 0.0
  %v654 = vmax.f32 %v633, 0.0
  %v655 = vmax.f32 %v634, 0.0
  %v656 = vmax.f32 %v635, 0.0
  %v657 = vmax.f32 %v636, 0.0
  %v658 = vmax.f32 %v637, 0.0
  %v659 = vmax.f32 %v638, 0.0
  %v660 = vmax.f32 %v639, 0.0
  %v661 = vmax.f32 %v640, 0.0
  %v662 = vmax.f32 %v641, 0.0
  %v663 = vmax.f32 %v642, 0.0
  %v664 = vmax.f32 %v643, 0.0
  %665 = vst.msk [vmem:[%s5] sm:$0xff] %vm371, %v644
  %666 = vst.msk [vmem:[%s5 + $0x8] sm:$0xff] %vm371, %v645
  %667 = vst.msk [vmem:[%s5 + $0x10] sm:$0xff] %vm371, %v646
  %668 = vst.msk [vmem:[%s5 + $0x18] sm:$0xff] %vm371, %v647
  %669 = vst.msk [vmem:[%s5 + $0x20] sm:$0xff] %vm371, %v648
  %670 = vst.msk [vmem:[%s5 + $0x28] sm:$0xff] %vm371, %v649
  %671 = vst.msk [vmem:[%s5 + $0x30] sm:$0xff] %vm371, %v650
  %672 = vst.msk [vmem:[%s5 + $0x38] sm:$0xff] %vm371, %v651
  %673 = vst.msk [vmem:[%s5 + $0x40] sm:$0xff] %vm371, %v652
  %674 = vst.msk [vmem:[%s5 + $0x48] sm:$0xff] %vm371, %v653
  %675 = vst.msk [vmem:[%s5 + $0x50] sm:$0xff] %vm371, %v654
  %676 = vst.msk [vmem:[%s5 + $0x58] sm:$0xff] %vm371, %v655
  %677 = vst.msk [vmem:[%s5 + $0x60] sm:$0xff] %vm371, %v656
  %678 = vst.msk [vmem:[%s5 + $0x68] sm:$0xff] %vm371, %v657
  %679 = vst.msk [vmem:[%s5 + $0x70] sm:$0xff] %vm371, %v658
  %680 = vst.msk [vmem:[%s5 + $0x78] sm:$0xff] %vm371, %v659
  %681 = vst.msk [vmem:[%s5 + $0x80] sm:$0xff] %vm371, %v660
  %682 = vst.msk [vmem:[%s5 + $0x88] sm:$0xff] %vm371, %v661
  %683 = vst.msk [vmem:[%s5 + $0x90] sm:$0xff] %vm371, %v662
  %684 = vst.msk [vmem:[%s5 + $0x98] sm:$0xff] %vm371, %v663
  %685 = vst.msk [vmem:[%s5 + $0xa0] sm:$0x3] %vm411, %v664
  // Predicated region
  $region22: #{decoder_forward.2} parent=0 // pred_check
    _
  $region23: #{decoder_forward.2} parent=0 // pred_check_branch
    %687 = sbr.rel (0) target = $region25
  $region24: #{decoder_forward.2} parent=0 // pred_region
    _
  $region25: #{decoder_forward.2} parent=0 // pred_fallthru
    _
  // Predicated region
  $region26: #{decoder_forward.2} parent=0 // pred_check
    _
  $region27: #{decoder_forward.2} parent=0 // pred_check_branch
    %689 = sbr.rel (0) target = $region29
  $region28: #{decoder_forward.2} parent=0 // pred_region
    _
  $region29: #{decoder_forward.2} parent=0 // pred_fallthru
    _

// kernel: decoder_forward.3
$region0: #{decoder_forward.3}
  #allocation0 [shape = 'u32[]', space=smem, size = 0x4, offset = 0x4, fixed_abs, tag = 'smem constant byte address 0x4 - core index']
  #allocation1 [shape = 'u32[144,128]{1,0:T(1,128)}', space=vmem, size = 0x12000, scoped, tag = 'internal scratch']
  %s0 = inlined_call_operand.vmem [shape: bf16[768,72], index: 0, kind: input, shape index: {}]
  %s1 = inlined_call_operand.vmem [shape: bf16[72,32], index: 1, kind: input, shape index: {}]
  %s2 = inlined_call_operand.vmem [shape: f32[1,32], index: 2, kind: input, shape index: {}]
  %s3 = inlined_call_operand.vmem [shape: f32[768,32], index: 3, kind: output, shape index: {}]
  %s4 = sld [smem:[#allocation0]]
  $region45: #{decoder_forward.3} parent=0
    _
  %s6 = ssub.s32 1, %s4
  %s7 = scalar_select 0, %s6, %s4
  loop: start=0, step=1, limit=4
  $region2: #{decoder_forward.3} parent=0 // loop_pre_header
    _
  $region3: #{decoder_forward.3} parent=0 // loop_header
    %s9 = sphi 0, %s13
    %p10 = scmp.ge.s32.totalorder %s9, 4
    %s19 = sphi 0, %s21
    %s22 = sphi 0, %s19
    %s23 = sphi 0, %s22
    %s39 = sphi 0, %s23
    %s43 = sphi 0, %s43
    %s45 = sphi 0, %s43
    %s46 = sphi 0, %s45
    %s60 = sphi 0, %s46
    %s64 = sphi 0, %s64
    %s66 = sphi 0, %s64
    %s67 = sphi 0, %s66
    %s81 = sphi 0, %s67
    %s87 = sphi 0, %s89
    %s90 = sphi 0, %s87
    %s91 = sphi 0, %s90
    %s107 = sphi 0, %s91
  $region4: #{decoder_forward.3} parent=0 // loop_header_branch
    %12 = sbr.rel (%p10) target = $region8
  $region5: #{decoder_forward.3} parent=0 // loop_body
    %s14 = ssub.s32 %s9, 1
    %s15 = ssub.s32 %s9, 2
    %s16 = sadd.s32 %s9, 1
    %s17 = ssub.s32 %s9, %s16
    %p18 = scmp.eq.s32.totalorder %s17, 0
    %s20 = sadd.s32 %s19, 1
    %s21 = scalar_select %p18, %s19, %s20
    %p24 = pneg %p18
    %p25 = scmp.eq.s32.totalorder %s9, 1
    %p26 = por %p24, %p25
    %p27 = scmp.ne.s32.totalorder %s19, %s22
    %p28 = scmp.eq.s32.totalorder %s9, 0
    %p29 = por %p27, %p28
    %p30 = scmp.ne.s32.totalorder %s19, %s22
    %p31 = scmp.eq.s32.totalorder %s14, 1
    %p32 = por %p30, %p31
    %p33 = scmp.ne.s32.totalorder %s22, %s23
    %p34 = scmp.eq.s32.totalorder %s14, 0
    %p35 = por %p33, %p34
    %p36 = scmp.ne.s32.totalorder %s22, %s23
    %p37 = scmp.eq.s32.totalorder %s15, 1
    %p38 = por %p36, %p37
    %p40 = scmp.ne.s32.totalorder %s23, %s39
    %p41 = scmp.eq.s32.totalorder %s15, 0
    %p42 = por %p40, %p41
    %s44 = sadd.s32 %s43, 1
    %p47 = scmp.eq.s32.totalorder %s9, 1
    %p48 = scmp.ne.s32.totalorder %s43, %s45
    %p49 = scmp.eq.s32.totalorder %s9, 0
    %p50 = por %p48, %p49
    %p51 = scmp.ne.s32.totalorder %s43, %s45
    %p52 = scmp.eq.s32.totalorder %s14, 1
    %p53 = por %p51, %p52
    %p54 = scmp.ne.s32.totalorder %s45, %s46
    %p55 = scmp.eq.s32.totalorder %s14, 0
    %p56 = por %p54, %p55
    %p57 = scmp.ne.s32.totalorder %s45, %s46
    %p58 = scmp.eq.s32.totalorder %s15, 1
    %p59 = por %p57, %p58
    %p61 = scmp.ne.s32.totalorder %s46, %s60
    %p62 = scmp.eq.s32.totalorder %s15, 0
    %p63 = por %p61, %p62
    %s65 = sadd.s32 %s64, 1
    %p68 = scmp.eq.s32.totalorder %s9, 1
    %p69 = scmp.ne.s32.totalorder %s64, %s66
    %p70 = scmp.eq.s32.totalorder %s9, 0
    %p71 = por %p69, %p70
    %p72 = scmp.ne.s32.totalorder %s64, %s66
    %p73 = scmp.eq.s32.totalorder %s14, 1
    %p74 = por %p72, %p73
    %p75 = scmp.ne.s32.totalorder %s66, %s67
    %p76 = scmp.eq.s32.totalorder %s14, 0
    %p77 = por %p75, %p76
    %p78 = scmp.ne.s32.totalorder %s66, %s67
    %p79 = scmp.eq.s32.totalorder %s15, 1
    %p80 = por %p78, %p79
    %p82 = scmp.ne.s32.totalorder %s67, %s81
    %p83 = scmp.eq.s32.totalorder %s15, 0
    %p84 = por %p82, %p83
    %s85 = ssub.s32 %s9, %s16
    %p86 = scmp.eq.s32.totalorder %s85, 0
    %s88 = sadd.s32 %s87, 1
    %s89 = scalar_select %p86, %s87, %s88
    %p92 = pneg %p86
    %p93 = scmp.eq.s32.totalorder %s9, 1
    %p94 = por %p92, %p93
    %p95 = scmp.ne.s32.totalorder %s87, %s90
    %p96 = scmp.eq.s32.totalorder %s9, 0
    %p97 = por %p95, %p96
    %p98 = scmp.ne.s32.totalorder %s87, %s90
    %p99 = scmp.eq.s32.totalorder %s14, 1
    %p100 = por %p98, %p99
    %p101 = scmp.ne.s32.totalorder %s90, %s91
    %p102 = scmp.eq.s32.totalorder %s14, 0
    %p103 = por %p101, %p102
    %p104 = scmp.ne.s32.totalorder %s90, %s91
    %p105 = scmp.eq.s32.totalorder %s15, 1
    %p106 = por %p104, %p105
    %p108 = scmp.ne.s32.totalorder %s91, %s107
    %p109 = scmp.eq.s32.totalorder %s15, 0
    %p110 = por %p108, %p109
    %p111 = scmp.le.s32.totalorder 1, %s9
    %p112 = scmp.lt.s32.totalorder %s9, 3
    %p113 = pnand %p111, %p112
    %p114 = pneg %p113
    // Predicated region
    $region9: #{decoder_forward.3} parent=5 // pred_check
      _
    $region10: #{decoder_forward.3} parent=5 // pred_check_branch
      %116 = sbr.rel (%p113) target = $region12
    $region11: #{decoder_forward.3} parent=5 // pred_region
      %s117 = ssub.s32 %s9, 1
      // Predicated region
      $region13: #{decoder_forward.3} parent=11 // pred_check
        %p118 = pneg %p56
      $region14: #{decoder_forward.3} parent=11 // pred_check_branch
        %120 = sbr.rel (%p118) target = $region16
      $region15: #{decoder_forward.3} parent=11 // pred_region
        _
      $region16: #{decoder_forward.3} parent=11 // pred_fallthru
        _
      // Predicated region
      $region17: #{decoder_forward.3} parent=11 // pred_check
        %p121 = pneg %p77
      $region18: #{decoder_forward.3} parent=11 // pred_check_branch
        %123 = sbr.rel (%p121) target = $region20
      $region19: #{decoder_forward.3} parent=11 // pred_region
        _
      $region20: #{decoder_forward.3} parent=11 // pred_fallthru
        _
    $region12: #{decoder_forward.3} parent=5 // pred_fallthru
      _
    %p124 = scmp.lt.s32.totalorder %s9, 2
    // Predicated region
    $region21: #{decoder_forward.3} parent=5 // pred_check
      %p125 = pneg %p124
    $region22: #{decoder_forward.3} parent=5 // pred_check_branch
      %127 = sbr.rel (%p125) target = $region24
    $region23: #{decoder_forward.3} parent=5 // pred_region
      // Predicated region
      $region25: #{decoder_forward.3} parent=23 // pred_check
        %p128 = pneg %p29
      $region26: #{decoder_forward.3} parent=23 // pred_check_branch
        %130 = sbr.rel (%p128) target = $region28
      $region27: #{decoder_forward.3} parent=23 // pred_region
        %s131 = smul.u32 48, %s9
        %p132 = scmp.lt.s32.totalorder %s131, 95
        %s133 = scalar_select %p132, %s131, 95
        %s134 = smul.addr %s133, 4
        %s135 = scalar_lea.vmem %s0, %s134
        %s136 = smul.u32 48, %s9
      $region28: #{decoder_forward.3} parent=23 // pred_fallthru
        _
    $region24: #{decoder_forward.3} parent=5 // pred_fallthru
      _
    %p137 = scmp.le.s32.totalorder 1, %s9
    %p138 = scmp.lt.s32.totalorder %s9, 3
    %p139 = pnand %p137, %p138
    %p140 = pneg %p139
    // Predicated region
    $region29: #{decoder_forward.3} parent=5 // pred_check
      _
    $region30: #{decoder_forward.3} parent=5 // pred_check_branch
      %142 = sbr.rel (%p139) target = $region32
    $region31: #{decoder_forward.3} parent=5 // pred_region
      %s143 = ssub.s32 %s9, 1
      %s144 = smul.u32 48, %s14
      %p145 = scmp.lt.s32.totalorder %s144, 95
      %s146 = scalar_select %p145, %s144, 95
      %s147 = smul.addr %s146, 4
      %s148 = scalar_lea.vmem %s0, %s147
      %p149 = pneg %p35
      %p150 = pneg %p32
      %p151 = pneg %p56
      %p152 = pneg %p53
      %p153 = pneg %p77
      %p154 = pneg %p74
      %p155 = pneg %p103
      %p156 = pneg %p100
      %s157 = smul.u32 48, %s14
      %p158 = scmp.lt.s32.totalorder %s157, 95
      %s159 = scalar_select %p158, %s157, 95
      %s160 = smul.addr %s159, 8
      %s161 = scalar_lea.vmem %s3, %s160
      %s162 = smul.u32 48, %s14
      %p163 = scmp.lt.s32.totalorder %s162, 95
      %s164 = scalar_select %p163, %s162, 95
      %s165 = smul.addr %s164, 4
      %s166 = scalar_lea.vmem %s0, %s165
      %s167 = smul.u32 48, %s14
      %s168 = smul.u32 48, %s14
      %p169 = scmp.lt.s32.totalorder %s168, 95
      %s170 = scalar_select %p169, %s168, 95
      %s171 = smul.addr %s170, 8
      %s172 = scalar_lea.vmem %s3, %s171
      %s173 = smul.u32 48, %s14
      %v175 = vld [vmem:[%s166] sm:$0xf]
      %v176 = vld [vmem:[%s166 + $0x4] sm:$0xf]
      %v177 = vld [vmem:[%s166 + $0x8] sm:$0xf]
      %v178 = vld [vmem:[%s166 + $0xc] sm:$0xf]
      %v179 = vld [vmem:[%s166 + $0x10] sm:$0xf]
      %v180 = vld [vmem:[%s166 + $0x14] sm:$0xf]
      %v181 = vld [vmem:[%s166 + $0x18] sm:$0xf]
      %v182 = vld [vmem:[%s166 + $0x1c] sm:$0xf]
      %v183 = vld [vmem:[%s166 + $0x20] sm:$0xf]
      %v184 = vld [vmem:[%s166 + $0x24] sm:$0xf]
      %v185 = vld [vmem:[%s166 + $0x28] sm:$0xf]
      %v186 = vld [vmem:[%s166 + $0x2c] sm:$0xf]
      %v187 = vld [vmem:[%s166 + $0x30] sm:$0xf]
      %v188 = vld [vmem:[%s166 + $0x34] sm:$0xf]
      %v189 = vld [vmem:[%s166 + $0x38] sm:$0xf]
      %v190 = vld [vmem:[%s166 + $0x3c] sm:$0xf]
      %v191 = vld [vmem:[%s166 + $0x40] sm:$0xf]
      %v192 = vld [vmem:[%s166 + $0x44] sm:$0xf]
      %v193 = vld [vmem:[%s166 + $0x48] sm:$0xf]
      %v194 = vld [vmem:[%s166 + $0x4c] sm:$0xf]
      %v195 = vld [vmem:[%s166 + $0x50] sm:$0xf]
      %v196 = vld [vmem:[%s166 + $0x54] sm:$0xf]
      %v197 = vld [vmem:[%s166 + $0x58] sm:$0xf]
      %v198 = vld [vmem:[%s166 + $0x5c] sm:$0xf]
      %v199 = vld [vmem:[%s166 + $0x60] sm:$0xf]
      %v200 = vld [vmem:[%s166 + $0x64] sm:$0xf]
      %v201 = vld [vmem:[%s166 + $0x68] sm:$0xf]
      %v202 = vld [vmem:[%s166 + $0x6c] sm:$0xf]
      %v203 = vld [vmem:[%s166 + $0x70] sm:$0xf]
      %v204 = vld [vmem:[%s166 + $0x74] sm:$0xf]
      %v205 = vld [vmem:[%s166 + $0x78] sm:$0xf]
      %v206 = vld [vmem:[%s166 + $0x7c] sm:$0xf]
      %v207 = vld [vmem:[%s166 + $0x80] sm:$0xf]
      %v208 = vld [vmem:[%s166 + $0x84] sm:$0xf]
      %v209 = vld [vmem:[%s166 + $0x88] sm:$0xf]
      %v210 = vld [vmem:[%s166 + $0x8c] sm:$0xf]
      %v211 = vld [vmem:[%s166 + $0x90] sm:$0xf]
      %v212 = vld [vmem:[%s166 + $0x94] sm:$0xf]
      %v213 = vld [vmem:[%s166 + $0x98] sm:$0xf]
      %v214 = vld [vmem:[%s166 + $0x9c] sm:$0xf]
      %v215 = vld [vmem:[%s166 + $0xa0] sm:$0xf]
      %v216 = vld [vmem:[%s166 + $0xa4] sm:$0xf]
      %v217 = vld [vmem:[%s166 + $0xa8] sm:$0xf]
      %v218 = vld [vmem:[%s166 + $0xac] sm:$0xf]
      %v219 = vld [vmem:[%s166 + $0xb0] sm:$0xf]
      %v220 = vld [vmem:[%s166 + $0xb4] sm:$0xf]
      %v221 = vld [vmem:[%s166 + $0xb8] sm:$0xf]
      %v222 = vld [vmem:[%s166 + $0xbc] sm:$0xf]
      %v223 = vld [vmem:[%s1] sm:$0xf]
      %v224 = vld [vmem:[%s1 + $0x4] sm:$0xf]
      %v225 = vld [vmem:[%s1 + $0x8] sm:$0xf]
      %v226 = vld [vmem:[%s1 + $0xc] sm:$0xf]
      %v227 = vld [vmem:[%s1 + $0x10] sm:$0xf]
      %v228 = vld [vmem:[%s1 + $0x14] sm:$0xf]
      %v229 = vld [vmem:[%s1 + $0x18] sm:$0xf]
      %v230 = vld [vmem:[%s1 + $0x1c] sm:$0xf]
      %v231 = vld [vmem:[%s1 + $0x20] sm:$0xf]
      %v232 = vld [vmem:[%s2] sm:$0x1]
      %v234 = vlaneseq
      %v235 = vshrl.u32 %v234, 7
      %v236 = vsub.s32 0, %v235
      %v237 = vrot.slane %v232, %v236
      %v287 = vunpack.c.l.b16 %v175
      %v288 = vunpack.c.l.b16 %v176
      %v289 = vunpack.c.l.b16 %v177
      %v290 = vunpack.c.l.b16 %v178
      %v291 = vunpack.c.l.b16 %v179
      %v292 = vunpack.c.l.b16 %v180
      %v293 = vunpack.c.l.b16 %v181
      %v294 = vunpack.c.l.b16 %v182
      %v295 = vunpack.c.l.b16 %v183
      %v296 = vunpack.c.l.b16 %v184
      %v297 = vunpack.c.l.b16 %v185
      %v298 = vunpack.c.l.b16 %v186
      %v299 = vunpack.c.l.b16 %v187
      %v300 = vunpack.c.l.b16 %v188
      %v301 = vunpack.c.l.b16 %v189
      %v302 = vunpack.c.l.b16 %v190
      %v303 = vunpack.c.l.b16 %v191
      %v304 = vunpack.c.l.b16 %v192
      %v305 = vunpack.c.l.b16 %v193
      %v306 = vunpack.c.l.b16 %v194
      %v307 = vunpack.c.l.b16 %v195
      %v308 = vunpack.c.l.b16 %v196
      %v309 = vunpack.c.l.b16 %v197
      %v310 = vunpack.c.l.b16 %v198
      %v311 = vunpack.c.l.b16 %v199
      %v312 = vunpack.c.l.b16 %v200
      %v313 = vunpack.c.l.b16 %v201
      %v314 = vunpack.c.l.b16 %v202
      %v315 = vunpack.c.l.b16 %v203
      %v316 = vunpack.c.l.b16 %v204
      %v317 = vunpack.c.l.b16 %v205
      %v318 = vunpack.c.l.b16 %v206
      %v319 = vunpack.c.l.b16 %v207
      %v320 = vunpack.c.l.b16 %v208
      %v321 = vunpack.c.l.b16 %v209
      %v322 = vunpack.c.l.b16 %v210
      %v323 = vunpack.c.l.b16 %v211
      %v324 = vunpack.c.l.b16 %v212
      %v325 = vunpack.c.l.b16 %v213
      %v326 = vunpack.c.l.b16 %v214
      %v327 = vunpack.c.l.b16 %v215
      %v328 = vunpack.c.l.b16 %v216
      %v329 = vunpack.c.l.b16 %v217
      %v330 = vunpack.c.l.b16 %v218
      %v331 = vunpack.c.l.b16 %v219
      %v332 = vunpack.c.l.b16 %v220
      %v333 = vunpack.c.l.b16 %v221
      %v334 = vunpack.c.l.b16 %v222
      %v335 = vpack.c.b16 %v288, %v287
      %v336 = vpack.c.b16 %v290, %v289
      %v337 = vpack.c.b16 %v292, %v291
      %v338 = vpack.c.b16 %v294, %v293
      %v339 = vpack.c.b16 %v296, %v295
      %v340 = vpack.c.b16 %v298, %v297
      %v341 = vpack.c.b16 %v300, %v299
      %v342 = vpack.c.b16 %v302, %v301
      %v343 = vpack.c.b16 %v304, %v303
      %v344 = vpack.c.b16 %v306, %v305
      %v345 = vpack.c.b16 %v308, %v307
      %v346 = vpack.c.b16 %v310, %v309
      %v347 = vpack.c.b16 %v312, %v311
      %v348 = vpack.c.b16 %v314, %v313
      %v349 = vpack.c.b16 %v316, %v315
      %v350 = vpack.c.b16 %v318, %v317
      %v351 = vpack.c.b16 %v320, %v319
      %v352 = vpack.c.b16 %v322, %v321
      %v353 = vpack.c.b16 %v324, %v323
      %v354 = vpack.c.b16 %v326, %v325
      %v355 = vpack.c.b16 %v328, %v327
      %v356 = vpack.c.b16 %v330, %v329
      %v357 = vpack.c.b16 %v332, %v331
      %v358 = vpack.c.b16 %v334, %v333
      %v368 = vunpack.c.l.b16 %v223
      %v369 = vunpack.c.l.b16 %v224
      %v370 = vunpack.c.l.b16 %v225
      %v371 = vunpack.c.l.b16 %v226
      %v372 = vunpack.c.l.b16 %v227
      %v373 = vunpack.c.l.b16 %v228
      %v374 = vunpack.c.l.b16 %v229
      %v375 = vunpack.c.l.b16 %v230
      %v376 = vunpack.c.l.b16 %v231
      %v377 = vpack.c.b16 %v369, %v368
      %v378 = vpack.c.b16 %v371, %v370
      %v379 = vpack.c.b16 %v373, %v372
      %v380 = vpack.c.b16 %v375, %v374
      %v381 = vpack.c.b16 %v376, %v376
      %vm386 = vcmask 588800
      %v388 = vsel %vm386, %v335, 0
      %v391 = vsel %vm386, %v336, 0
      %v394 = vsel %vm386, %v337, 0
      %v397 = vsel %vm386, %v338, 0
      %v400 = vsel %vm386, %v339, 0
      %v403 = vsel %vm386, %v340, 0
      %v406 = vsel %vm386, %v341, 0
      %v409 = vsel %vm386, %v342, 0
      %v412 = vsel %vm386, %v343, 0
      %v415 = vsel %vm386, %v344, 0
      %v418 = vsel %vm386, %v345, 0
      %v421 = vsel %vm386, %v346, 0
      %v424 = vsel %vm386, %v347, 0
      %v427 = vsel %vm386, %v348, 0
      %v430 = vsel %vm386, %v349, 0
      %v433 = vsel %vm386, %v350, 0
      %v436 = vsel %vm386, %v351, 0
      %v439 = vsel %vm386, %v352, 0
      %v442 = vsel %vm386, %v353, 0
      %v445 = vsel %vm386, %v354, 0
      %v448 = vsel %vm386, %v355, 0
      %v451 = vsel %vm386, %v356, 0
      %v454 = vsel %vm386, %v357, 0
      %v457 = vsel %vm386, %v358, 0
      %vm459 = vcmask 1043456
      %v461 = vsel %vm459, %v381, 0
      %463 = vmatprep.subr.bf16.mxu0 0
      %464 = vmatpush1.bf16.msra.mxu0 %v377
      %465 = vmatprep.subr.bf16.mxu0 0
      %466 = vmatpush1.bf16.msra.mxu0 %v378
      %467 = vmatprep.subr.bf16.mxu0 0
      %468 = vmatpush1.bf16.msra.mxu0 %v379
      %469 = vmatprep.subr.bf16.mxu0 0
      %470 = vmatpush1.bf16.msra.mxu0 %v380
      %471 = vmatprep.subr.bf16.mxu0 0
      %472 = vmatpush1.bf16.msra.mxu0 %v461
      %473 = vmatprep.subr.bf16.mxu0 0
      %474 = vmatpush1.bf16.msra.mxu0 0
      %475 = vmatprep.subr.bf16.mxu0 0
      %476 = vmatpush1.bf16.msra.mxu0 0
      %477 = vmatprep.subr.bf16.mxu0 0
      %478 = vmatpush1.bf16.msra.mxu0 0
      %479 = vmatprep.subr.bf16.mxu0 0
      %480 = vmatpush1.bf16.msra.mxu0 0
      %481 = vmatprep.subr.bf16.mxu0 0
      %482 = vmatpush1.bf16.msra.mxu0 0
      %483 = vmatprep.subr.bf16.mxu0 0
      %484 = vmatpush1.bf16.msra.mxu0 0
      %485 = vmatprep.subr.bf16.mxu0 0
      %486 = vmatpush1.bf16.msra.mxu0 0
      %487 = vmatprep.subr.bf16.mxu0 0
      %488 = vmatpush1.bf16.msra.mxu0 0
      %489 = vmatprep.subr.bf16.mxu0 0
      %490 = vmatpush1.bf16.msra.mxu0 0
      %491 = vmatprep.subr.bf16.mxu0 0
      %492 = vmatpush1.bf16.msra.mxu0 0
      %493 = vmatprep.subr.bf16.mxu0 0
      %494 = vmatpush1.bf16.msra.mxu0 0
      %495 = vmatprep.mubr.bf16.mxu0 0
      %496 = vmatmul.mubr.bf16.gmra.mrb[0].mxu0 %v388
      %v497 = vpop.f32.mrb[0].mxu0
      %v498 = vadd.f32 %v237, %v497
      %v499 = vpop.f32.mrb[0].mxu0
      %v500 = vpop.f32.mrb[0].mxu0
      %v501 = vadd.f32 %v237, %v500
      %v502 = vpop.f32.mrb[0].mxu0
      %503 = vmatprep.mubr.bf16.mxu0 0
      %504 = vmatmul.mubr.bf16.gmra.mrb[0].mxu0 %v391
      %v505 = vpop.f32.mrb[0].mxu0
      %v506 = vadd.f32 %v237, %v505
      %v507 = vpop.f32.mrb[0].mxu0
      %v508 = vpop.f32.mrb[0].mxu0
      %v509 = vadd.f32 %v237, %v508
      %v510 = vpop.f32.mrb[0].mxu0
      %511 = vmatprep.mubr.bf16.mxu0 0
      %512 = vmatmul.mubr.bf16.gmra.mrb[0].mxu0 %v394
      %v513 = vpop.f32.mrb[0].mxu0
      %v514 = vadd.f32 %v237, %v513
      %v515 = vpop.f32.mrb[0].mxu0
      %v516 = vpop.f32.mrb[0].mxu0
      %v517 = vadd.f32 %v237, %v516
      %v518 = vpop.f32.mrb[0].mxu0
      %519 = vmatprep.mubr.bf16.mxu0 0
      %520 = vmatmul.mubr.bf16.gmra.mrb[0].mxu0 %v397
      %v521 = vpop.f32.mrb[0].mxu0
      %v522 = vadd.f32 %v237, %v521
      %v523 = vpop.f32.mrb[0].mxu0
      %v524 = vpop.f32.mrb[0].mxu0
      %v525 = vadd.f32 %v237, %v524
      %v526 = vpop.f32.mrb[0].mxu0
      %527 = vmatprep.mubr.bf16.mxu0 0
      %528 = vmatmul.mubr.bf16.gmra.mrb[0].mxu0 %v400
      %v529 = vpop.f32.mrb[0].mxu0
      %v530 = vadd.f32 %v237, %v529
      %v531 = vpop.f32.mrb[0].mxu0
      %v532 = vpop.f32.mrb[0].mxu0
      %v533 = vadd.f32 %v237, %v532
      %v534 = vpop.f32.mrb[0].mxu0
      %535 = vmatprep.mubr.bf16.mxu0 0
      %536 = vmatmul.mubr.bf16.gmra.mrb[0].mxu0 %v403
      %v537 = vpop.f32.mrb[0].mxu0
      %v538 = vadd.f32 %v237, %v537
      %v539 = vpop.f32.mrb[0].mxu0
      %v540 = vpop.f32.mrb[0].mxu0
      %v541 = vadd.f32 %v237, %v540
      %v542 = vpop.f32.mrb[0].mxu0
      %543 = vmatprep.mubr.bf16.mxu0 0
      %544 = vmatmul.mubr.bf16.gmra.mrb[0].mxu0 %v406
      %v545 = vpop.f32.mrb[0].mxu0
      %v546 = vadd.f32 %v237, %v545
      %v547 = vpop.f32.mrb[0].mxu0
      %v548 = vpop.f32.mrb[0].mxu0
      %v549 = vadd.f32 %v237, %v548
      %v550 = vpop.f32.mrb[0].mxu0
      %551 = vmatprep.mubr.bf16.mxu0 0
      %552 = vmatmul.mubr.bf16.gmra.mrb[0].mxu0 %v409
      %v553 = vpop.f32.mrb[0].mxu0
      %v554 = vadd.f32 %v237, %v553
      %v555 = vpop.f32.mrb[0].mxu0
      %v556 = vpop.f32.mrb[0].mxu0
      %v557 = vadd.f32 %v237, %v556
      %v558 = vpop.f32.mrb[0].mxu0
      %559 = vmatprep.mubr.bf16.mxu0 0
      %560 = vmatmul.mubr.bf16.gmra.mrb[0].mxu0 %v412
      %v561 = vpop.f32.mrb[0].mxu0
      %v562 = vadd.f32 %v237, %v561
      %v563 = vpop.f32.mrb[0].mxu0
      %v564 = vpop.f32.mrb[0].mxu0
      %v565 = vadd.f32 %v237, %v564
      %v566 = vpop.f32.mrb[0].mxu0
      %567 = vmatprep.mubr.bf16.mxu0 0
      %568 = vmatmul.mubr.bf16.gmra.mrb[0].mxu0 %v415
      %v569 = vpop.f32.mrb[0].mxu0
      %v570 = vadd.f32 %v237, %v569
      %v571 = vpop.f32.mrb[0].mxu0
      %v572 = vpop.f32.mrb[0].mxu0
      %v573 = vadd.f32 %v237, %v572
      %v574 = vpop.f32.mrb[0].mxu0
      %575 = vmatprep.mubr.bf16.mxu0 0
      %576 = vmatmul.mubr.bf16.gmra.mrb[0].mxu0 %v418
      %v577 = vpop.f32.mrb[0].mxu0
      %v578 = vadd.f32 %v237, %v577
      %v579 = vpop.f32.mrb[0].mxu0
      %v580 = vpop.f32.mrb[0].mxu0
      %v581 = vadd.f32 %v237, %v580
      %v582 = vpop.f32.mrb[0].mxu0
      %583 = vmatprep.mubr.bf16.mxu0 0
      %584 = vmatmul.mubr.bf16.gmra.mrb[0].mxu0 %v421
      %v585 = vpop.f32.mrb[0].mxu0
      %v586 = vadd.f32 %v237, %v585
      %v587 = vpop.f32.mrb[0].mxu0
      %v588 = vpop.f32.mrb[0].mxu0
      %v589 = vadd.f32 %v237, %v588
      %v590 = vpop.f32.mrb[0].mxu0
      %591 = vmatprep.mubr.bf16.mxu0 0
      %592 = vmatmul.mubr.bf16.gmra.mrb[0].mxu0 %v424
      %v593 = vpop.f32.mrb[0].mxu0
      %v594 = vadd.f32 %v237, %v593
      %v595 = vpop.f32.mrb[0].mxu0
      %v596 = vpop.f32.mrb[0].mxu0
      %v597 = vadd.f32 %v237, %v596
      %v598 = vpop.f32.mrb[0].mxu0
      %599 = vmatprep.mubr.bf16.mxu0 0
      %600 = vmatmul.mubr.bf16.gmra.mrb[0].mxu0 %v427
      %v601 = vpop.f32.mrb[0].mxu0
      %v602 = vadd.f32 %v237, %v601
      %v603 = vpop.f32.mrb[0].mxu0
      %v604 = vpop.f32.mrb[0].mxu0
      %v605 = vadd.f32 %v237, %v604
      %v606 = vpop.f32.mrb[0].mxu0
      %607 = vmatprep.mubr.bf16.mxu0 0
      %608 = vmatmul.mubr.bf16.gmra.mrb[0].mxu0 %v430
      %v609 = vpop.f32.mrb[0].mxu0
      %v610 = vadd.f32 %v237, %v609
      %v611 = vpop.f32.mrb[0].mxu0
      %v612 = vpop.f32.mrb[0].mxu0
      %v613 = vadd.f32 %v237, %v612
      %v614 = vpop.f32.mrb[0].mxu0
      %615 = vmatprep.mubr.bf16.mxu0 0
      %616 = vmatmul.mubr.bf16.gmra.mrb[0].mxu0 %v433
      %v617 = vpop.f32.mrb[0].mxu0
      %v618 = vadd.f32 %v237, %v617
      %v619 = vpop.f32.mrb[0].mxu0
      %v620 = vpop.f32.mrb[0].mxu0
      %v621 = vadd.f32 %v237, %v620
      %v622 = vpop.f32.mrb[0].mxu0
      %623 = vmatprep.mubr.bf16.mxu0 0
      %624 = vmatmul.mubr.bf16.gmra.mrb[0].mxu0 %v436
      %v625 = vpop.f32.mrb[0].mxu0
      %v626 = vadd.f32 %v237, %v625
      %v627 = vpop.f32.mrb[0].mxu0
      %v628 = vpop.f32.mrb[0].mxu0
      %v629 = vadd.f32 %v237, %v628
      %v630 = vpop.f32.mrb[0].mxu0
      %631 = vmatprep.mubr.bf16.mxu0 0
      %632 = vmatmul.mubr.bf16.gmra.mrb[0].mxu0 %v439
      %v633 = vpop.f32.mrb[0].mxu0
      %v634 = vadd.f32 %v237, %v633
      %v635 = vpop.f32.mrb[0].mxu0
      %v636 = vpop.f32.mrb[0].mxu0
      %v637 = vadd.f32 %v237, %v636
      %v638 = vpop.f32.mrb[0].mxu0
      %639 = vmatprep.mubr.bf16.mxu0 0
      %640 = vmatmul.mubr.bf16.gmra.mrb[0].mxu0 %v442
      %v641 = vpop.f32.mrb[0].mxu0
      %v642 = vadd.f32 %v237, %v641
      %v643 = vpop.f32.mrb[0].mxu0
      %v644 = vpop.f32.mrb[0].mxu0
      %v645 = vadd.f32 %v237, %v644
      %v646 = vpop.f32.mrb[0].mxu0
      %647 = vmatprep.mubr.bf16.mxu0 0
      %648 = vmatmul.mubr.bf16.gmra.mrb[0].mxu0 %v445
      %v649 = vpop.f32.mrb[0].mxu0
      %v650 = vadd.f32 %v237, %v649
      %v651 = vpop.f32.mrb[0].mxu0
      %v652 = vpop.f32.mrb[0].mxu0
      %v653 = vadd.f32 %v237, %v652
      %v654 = vpop.f32.mrb[0].mxu0
      %655 = vmatprep.mubr.bf16.mxu0 0
      %656 = vmatmul.mubr.bf16.gmra.mrb[0].mxu0 %v448
      %v657 = vpop.f32.mrb[0].mxu0
      %v658 = vadd.f32 %v237, %v657
      %v659 = vpop.f32.mrb[0].mxu0
      %v660 = vpop.f32.mrb[0].mxu0
      %v661 = vadd.f32 %v237, %v660
      %v662 = vpop.f32.mrb[0].mxu0
      %663 = vmatprep.mubr.bf16.mxu0 0
      %664 = vmatmul.mubr.bf16.gmra.mrb[0].mxu0 %v451
      %v665 = vpop.f32.mrb[0].mxu0
      %v666 = vadd.f32 %v237, %v665
      %v667 = vpop.f32.mrb[0].mxu0
      %v668 = vpop.f32.mrb[0].mxu0
      %v669 = vadd.f32 %v237, %v668
      %v670 = vpop.f32.mrb[0].mxu0
      %671 = vmatprep.mubr.bf16.mxu0 0
      %672 = vmatmul.mubr.bf16.gmra.mrb[0].mxu0 %v454
      %v673 = vpop.f32.mrb[0].mxu0
      %v674 = vadd.f32 %v237, %v673
      %v675 = vpop.f32.mrb[0].mxu0
      %v676 = vpop.f32.mrb[0].mxu0
      %v677 = vadd.f32 %v237, %v676
      %v678 = vpop.f32.mrb[0].mxu0
      %679 = vmatprep.mubr.bf16.mxu0 0
      %680 = vmatmul.mubr.bf16.gmra.mrb[0].mxu0 %v457
      %v681 = vpop.f32.mrb[0].mxu0
      %v682 = vadd.f32 %v237, %v681
      %v683 = vpop.f32.mrb[0].mxu0
      %v684 = vpop.f32.mrb[0].mxu0
      %v685 = vadd.f32 %v237, %v684
      %v686 = vpop.f32.mrb[0].mxu0
      %687 = vdwg.mxu0
      %vm688 = vcmask 261120
      %689 = vst.msk [vmem:[%s172] sm:$0xff] %vm688, %v498
      %690 = vst.msk [vmem:[%s172 + $0x8] sm:$0xff] %vm688, %v501
      %691 = vst.msk [vmem:[%s172 + $0x10] sm:$0xff] %vm688, %v506
      %692 = vst.msk [vmem:[%s172 + $0x18] sm:$0xff] %vm688, %v509
      %693 = vst.msk [vmem:[%s172 + $0x20] sm:$0xff] %vm688, %v514
      %694 = vst.msk [vmem:[%s172 + $0x28] sm:$0xff] %vm688, %v517
      %695 = vst.msk [vmem:[%s172 + $0x30] sm:$0xff] %vm688, %v522
      %696 = vst.msk [vmem:[%s172 + $0x38] sm:$0xff] %vm688, %v525
      %697 = vst.msk [vmem:[%s172 + $0x40] sm:$0xff] %vm688, %v530
      %698 = vst.msk [vmem:[%s172 + $0x48] sm:$0xff] %vm688, %v533
      %699 = vst.msk [vmem:[%s172 + $0x50] sm:$0xff] %vm688, %v538
      %700 = vst.msk [vmem:[%s172 + $0x58] sm:$0xff] %vm688, %v541
      %701 = vst.msk [vmem:[%s172 + $0x60] sm:$0xff] %vm688, %v546
      %702 = vst.msk [vmem:[%s172 + $0x68] sm:$0xff] %vm688, %v549
      %703 = vst.msk [vmem:[%s172 + $0x70] sm:$0xff] %vm688, %v554
      %704 = vst.msk [vmem:[%s172 + $0x78] sm:$0xff] %vm688, %v557
      %705 = vst.msk [vmem:[%s172 + $0x80] sm:$0xff] %vm688, %v562
      %706 = vst.msk [vmem:[%s172 + $0x88] sm:$0xff] %vm688, %v565
      %707 = vst.msk [vmem:[%s172 + $0x90] sm:$0xff] %vm688, %v570
      %708 = vst.msk [vmem:[%s172 + $0x98] sm:$0xff] %vm688, %v573
      %709 = vst.msk [vmem:[%s172 + $0xa0] sm:$0xff] %vm688, %v578
      %710 = vst.msk [vmem:[%s172 + $0xa8] sm:$0xff] %vm688, %v581
      %711 = vst.msk [vmem:[%s172 + $0xb0] sm:$0xff] %vm688, %v586
      %712 = vst.msk [vmem:[%s172 + $0xb8] sm:$0xff] %vm688, %v589
      %713 = vst.msk [vmem:[%s172 + $0xc0] sm:$0xff] %vm688, %v594
      %714 = vst.msk [vmem:[%s172 + $0xc8] sm:$0xff] %vm688, %v597
      %715 = vst.msk [vmem:[%s172 + $0xd0] sm:$0xff] %vm688, %v602
      %716 = vst.msk [vmem:[%s172 + $0xd8] sm:$0xff] %vm688, %v605
      %717 = vst.msk [vmem:[%s172 + $0xe0] sm:$0xff] %vm688, %v610
      %718 = vst.msk [vmem:[%s172 + $0xe8] sm:$0xff] %vm688, %v613
      %719 = vst.msk [vmem:[%s172 + $0xf0] sm:$0xff] %vm688, %v618
      %720 = vst.msk [vmem:[%s172 + $0xf8] sm:$0xff] %vm688, %v621
      %721 = vst.msk [vmem:[%s172 + $0x100] sm:$0xff] %vm688, %v626
      %722 = vst.msk [vmem:[%s172 + $0x108] sm:$0xff] %vm688, %v629
      %723 = vst.msk [vmem:[%s172 + $0x110] sm:$0xff] %vm688, %v634
      %724 = vst.msk [vmem:[%s172 + $0x118] sm:$0xff] %vm688, %v637
      %725 = vst.msk [vmem:[%s172 + $0x120] sm:$0xff] %vm688, %v642
      %726 = vst.msk [vmem:[%s172 + $0x128] sm:$0xff] %vm688, %v645
      %727 = vst.msk [vmem:[%s172 + $0x130] sm:$0xff] %vm688, %v650
      %728 = vst.msk [vmem:[%s172 + $0x138] sm:$0xff] %vm688, %v653
      %729 = vst.msk [vmem:[%s172 + $0x140] sm:$0xff] %vm688, %v658
      %730 = vst.msk [vmem:[%s172 + $0x148] sm:$0xff] %vm688, %v661
      %731 = vst.msk [vmem:[%s172 + $0x150] sm:$0xff] %vm688, %v666
      %732 = vst.msk [vmem:[%s172 + $0x158] sm:$0xff] %vm688, %v669
      %733 = vst.msk [vmem:[%s172 + $0x160] sm:$0xff] %vm688, %v674
      %734 = vst.msk [vmem:[%s172 + $0x168] sm:$0xff] %vm688, %v677
      %735 = vst.msk [vmem:[%s172 + $0x170] sm:$0xff] %vm688, %v682
      %736 = vst.msk [vmem:[%s172 + $0x178] sm:$0xff] %vm688, %v685
      %s737 = smul.u32 48, %s14
      %p738 = scmp.lt.s32.totalorder %s737, 95
      %s739 = scalar_select %p738, %s737, 95
      %s740 = smul.addr %s739, 8
      %s741 = scalar_lea.vmem %s3, %s740
      // Predicated region
      $region33: #{decoder_forward.3} parent=31 // pred_check
        %p742 = pneg %p100
      $region34: #{decoder_forward.3} parent=31 // pred_check_branch
        %744 = sbr.rel (%p742) target = $region36
      $region35: #{decoder_forward.3} parent=31 // pred_region
        %s745 = smul.u32 48, %s14
      $region36: #{decoder_forward.3} parent=31 // pred_fallthru
        _
    $region32: #{decoder_forward.3} parent=5 // pred_fallthru
      _
    %p746 = scmp.le.s32.totalorder 2, %s9
    // Predicated region
    $region37: #{decoder_forward.3} parent=5 // pred_check
      %p747 = pneg %p746
    $region38: #{decoder_forward.3} parent=5 // pred_check_branch
      %749 = sbr.rel (%p747) target = $region40
    $region39: #{decoder_forward.3} parent=5 // pred_region
      %s750 = ssub.s32 %s9, 2
      // Predicated region
      $region41: #{decoder_forward.3} parent=39 // pred_check
        %p751 = pneg %p106
      $region42: #{decoder_forward.3} parent=39 // pred_check_branch
        %753 = sbr.rel (%p751) target = $region44
      $region43: #{decoder_forward.3} parent=39 // pred_region
        %s754 = smul.u32 48, %s15
        %p755 = scmp.lt.s32.totalorder %s754, 95
        %s756 = scalar_select %p755, %s754, 95
        %s757 = smul.addr %s756, 8
        %s758 = scalar_lea.vmem %s3, %s757
      $region44: #{decoder_forward.3} parent=39 // pred_fallthru
        _
    $region40: #{decoder_forward.3} parent=5 // pred_fallthru
      _
  $region6: #{decoder_forward.3} parent=0 // loop_footer
    %s13 = sadd.s32 1, %s9
  $region7: #{decoder_forward.3} parent=0 // loop_footer_branch
    %8 = sbr.rel target = $region3
  $region8: #{decoder_forward.3} parent=0 // loop_exit
    _

</llo_original>
